<compile_context>
chip_gen: v5e
topology: v5e:2x2
jax: 0.10.0
libtpu: 0.0.40
codegen_flags: <defaults>
</compile_context>

<pallas_src>
import math
from functools import partial

import jax
import jax.numpy as jnp
import numpy as np
from jax.experimental import pallas as pl
from jax.experimental.pallas import tpu as pltpu

VMEM_SPEC = pl.BlockSpec(memory_space=pltpu.MemorySpace.VMEM)


def _sigmoid(x):
    # explicit form (EUP exp + divide) to avoid any logistic-lowering surprises
    return 1.0 / (1.0 + jnp.exp(-x))


# ----------------------------------------------------------------------------
# Fused Pallas kernel: entire VTAE forward pass
# ----------------------------------------------------------------------------
def vtae_kernel(xf_ref, xbrev_ref, noise_ref,
                e_wih_ref, e_whh_ref, e_bi_ref, e_bhn_ref,
                d_wih_ref, d_whh_ref, d_bi_ref, d_bhn_ref,
                wh_ref, bh_ref, wd_ref, bd_ref,
                z_ref, rec_ref,
                enc_out_ref, dec_out_ref):
    T = xf_ref.shape[0]
    H2 = e_bhn_ref.shape[1]          # fused state width = 2 * hidden
    H = H2 // 2
    Z = z_ref.shape[1]

    def dot(a, b):
        return jnp.dot(a, b, preferred_element_type=jnp.float32)

    def reverse_time(a):
        # static time reversal (T is small & static); one-time sublane concat
        n = a.shape[0]
        return jnp.concatenate(
            [a[i:i + 1, :] for i in range(n - 1, -1, -1)], axis=0)

    def fused_bigru(x_fwd, x_bwd_rev, wih_ref, whh_ref, bi_ref, bhn_ref,
                    out_ref):
        """One fused fwd+bwd GRU recurrence at rows=1.

        x_fwd:     (T, Din)  input in natural time order (forward direction)
        x_bwd_rev: (T, Din)  input already time-reversed (backward direction)
        Writes out_ref (T, 2H): [:, :H] fwd outputs, [:, H:] bwd outputs, both
        indexed by NATURAL time.
        """
        nsteps = x_fwd.shape[0]
        # One input-side GEMM for all steps / gates / directions.
        # Column layout (gate-major): [r_f r_b | z_f z_b | n_f n_b].
        x_fused = jnp.concatenate([x_fwd, x_bwd_rev], axis=-1)      # (T, 2Din)
        gi = dot(x_fused, wih_ref[...]) + bi_ref[...]               # (T, 6H)
        whh = whh_ref[...]                                          # (2H, 6H)
        bhn = bhn_ref[...]                                          # (1, 2H)
        h = jnp.zeros((1, H2), jnp.float32)                         # [h_f|h_b]
        for s in range(nsteps):
            gh = dot(h, whh)                                        # (1, 6H)
            gi_s = gi[s:s + 1, :]
            rz = _sigmoid(gi_s[:, :2 * H2] + gh[:, :2 * H2])        # (1, 4H)
            r = rz[:, :H2]
            u = rz[:, H2:]
            n = jnp.tanh(gi_s[:, 2 * H2:] + r * (gh[:, 2 * H2:] + bhn))
            h = (1.0 - u) * n + u * h
            # fwd output at natural time s; bwd output belongs to time T-1-s
            out_ref[s:s + 1, :H] = h[:, :H]
            out_ref[nsteps - 1 - s:nsteps - s, H:] = h[:, H:]

    # ---------------- encoder bi-GRU (only the consumed rows) ----------------
    fused_bigru(xf_ref[...], xbrev_ref[...],
                e_wih_ref, e_whh_ref, e_bi_ref, e_bhn_ref, enc_out_ref)

    # ---------------- VAE head (single packed matmul) ----------------
    zcat = jnp.maximum(enc_out_ref[...], 0.0)                       # (T, 2H)
    head = dot(zcat, wh_ref[...]) + bh_ref[...]                     # (T, 2Z)
    mean = head[:, :Z]
    log_std = head[:, Z:]
    zlat = mean + noise_ref[...] * jnp.exp(log_std)                 # (T, Z)
    z_ref[...] = zlat

    # ---------------- decoder bi-GRU (batch collapsed to 1) ----------------
    fused_bigru(zlat, reverse_time(zlat),
                d_wih_ref, d_whh_ref, d_bi_ref, d_bhn_ref, dec_out_ref)

    # ---------------- decoder head (single packed matmul) ----------------
    hcat = jnp.maximum(dec_out_ref[...], 0.0)                       # (T, 2H)
    rec_ref[...] = dot(hcat, wd_ref[...]) + bd_ref[...]             # (T, D)


# ----------------------------------------------------------------------------
# Wrapper: one grid-less pallas_call; everything resident in VMEM (<< 1 MiB).
# ----------------------------------------------------------------------------
@partial(jax.jit, static_argnums=(3,))
def vtae_forward(x, noise, packed, max_seq):
    T, B, D = x.shape
    Z = noise.shape[1]
    H2 = packed["e_bhn"].shape[1]

    # Only the encoder rows that are consumed: fwd batch row B-1, bwd row 0
    # (preserves PyTorch's z[:, -1, :H] / z[:, 0, -H:] semantics). Layout
    # plumbing only — the bwd row is pre-reversed in time for the fused chain.
    x_f = x[:, B - 1, :]                       # (T, D)
    x_b_rev = jnp.flip(x[:, 0, :], axis=0)     # (T, D)

    inputs = (x_f, x_b_rev, noise,
              packed["e_wih"], packed["e_whh"], packed["e_bi"], packed["e_bhn"],
              packed["d_wih"], packed["d_whh"], packed["d_bi"], packed["d_bhn"],
              packed["wh"], packed["bh"], packed["wd"], packed["bd"])

    z, rec = pl.pallas_call(
        vtae_kernel,
        out_shape=(jax.ShapeDtypeStruct((T, Z), jnp.float32),
                   jax.ShapeDtypeStruct((T, D), jnp.float32)),
        in_specs=[VMEM_SPEC] * len(inputs),
        out_specs=(VMEM_SPEC, VMEM_SPEC),
        scratch_shapes=[pltpu.VMEM((T, H2), jnp.float32),   # encoder outputs
                        pltpu.VMEM((T, H2), jnp.float32)],  # decoder outputs
    )(*inputs)

    # Exact repeat_interleave: all decoder batch rows are identical.
    x_rec = jnp.broadcast_to(rec[:, None, :], (T, max_seq, D))
    return z, x_rec


# ----------------------------------------------------------------------------
# Parameter init (PyTorch-style U(-1/sqrt(fan), 1/sqrt(fan))), natural layout.
# Gate order is PyTorch's (r, z, n); weights pre-transposed to (in, out).
# ----------------------------------------------------------------------------
def _init_gru_params(key, input_size, hidden_size):
    k = 1.0 / math.sqrt(hidden_size)
    keys = jax.random.split(key, 8)
    H = hidden_size

    def U(kk, shape):
        return jax.random.uniform(kk, shape, jnp.float32, -k, k)

    return {
        "wih_f": U(keys[0], (3, input_size, H)),
        "whh_f": U(keys[1], (3, H, H)),
        "bih_f": U(keys[2], (3, 1, H)),
        "bhh_f": U(keys[3], (3, 1, H)),
        "wih_b": U(keys[4], (3, input_size, H)),
        "whh_b": U(keys[5], (3, H, H)),
        "bih_b": U(keys[6], (3, 1, H)),
        "bhh_b": U(keys[7], (3, 1, H)),
    }


def _init_linear_params(key, in_features, out_features):
    k = 1.0 / math.sqrt(in_features)
    k1, k2, k3 = jax.random.split(key, 3)
    half = in_features // 2
    return {
        "wf": jax.random.uniform(k1, (half, out_features), jnp.float32, -k, k),
        "wb": jax.random.uniform(k2, (half, out_features), jnp.float32, -k, k),
        "b": jax.random.uniform(k3, (1, out_features), jnp.float32, -k, k),
    }


def init_vtae_params(key, in_dim, hidden_dim, z_dim):
    k0, k1, k2, k3, k4 = jax.random.split(key, 5)
    return {
        "en_gru": _init_gru_params(k0, in_dim, hidden_dim),
        "en_d1": _init_linear_params(k1, 2 * hidden_dim, z_dim),
        "en_d2": _init_linear_params(k2, 2 * hidden_dim, z_dim),
        "de_gru": _init_gru_params(k3, z_dim, hidden_dim),
        "de_d": _init_linear_params(k4, 2 * hidden_dim, in_dim),
    }


# ----------------------------------------------------------------------------
# Offline weight repacking for the fused kernel layout.
# ----------------------------------------------------------------------------
def pack_vtae_params(params):
    def pack_bigru(p):
        H = p["whh_f"].shape[-1]
        din = p["wih_f"].shape[1]
        G = 6 * H
        wih = jnp.zeros((2 * din, G), jnp.float32)
        whh = jnp.zeros((2 * H, G), jnp.float32)
        bi = jnp.zeros((1, G), jnp.float32)
        for g in range(3):                       # gate-major: r, z, n
            cf = slice(2 * g * H, (2 * g + 1) * H)       # fwd columns
            cb = slice((2 * g + 1) * H, (2 * g + 2) * H)  # bwd columns
            wih = wih.at[:din, cf].set(p["wih_f"][g])
            wih = wih.at[din:, cb].set(p["wih_b"][g])
            whh = whh.at[:H, cf].set(p["whh_f"][g])       # block-diagonal
            whh = whh.at[H:, cb].set(p["whh_b"][g])
            # fold the r/z hidden biases into the input-side bias (exact);
            # the n-gate hidden bias stays separate (it is scaled by r)
            bf = p["bih_f"][g] + (p["bhh_f"][g] if g < 2 else 0.0)
            bb = p["bih_b"][g] + (p["bhh_b"][g] if g < 2 else 0.0)
            bi = bi.at[:, cf].set(bf)
            bi = bi.at[:, cb].set(bb)
        bhn = jnp.concatenate([p["bhh_f"][2], p["bhh_b"][2]], axis=-1)  # (1,2H)
        return wih, whh, bi, bhn

    e_wih, e_whh, e_bi, e_bhn = pack_bigru(params["en_gru"])
    d_wih, d_whh, d_bi, d_bhn = pack_bigru(params["de_gru"])

    # VAE head: columns [0:Z] = mean (en_d1), [Z:2Z] = log_std (en_d2);
    # rows [0:H] multiply relu(fwd), rows [H:2H] multiply relu(bwd).
    wh = jnp.concatenate([
        jnp.concatenate([params["en_d1"]["wf"], params["en_d2"]["wf"]], axis=1),
        jnp.concatenate([params["en_d1"]["wb"], params["en_d2"]["wb"]], axis=1),
    ], axis=0)
    bh = jnp.concatenate([params["en_d1"]["b"], params["en_d2"]["b"]], axis=1)

    wd = jnp.concatenate([params["de_d"]["wf"], params["de_d"]["wb"]], axis=0)
    bd = params["de_d"]["b"]

    return dict(e_wih=e_wih, e_whh=e_whh, e_bi=e_bi, e_bhn=e_bhn,
                d_wih=d_wih, d_whh=d_whh, d_bi=d_bi, d_bhn=d_bhn,
                wh=wh, bh=bh, wd=wd, bd=bd)


# ----------------------------------------------------------------------------
# Pure-JAX reference (full, non-collapsed decoder) for correctness check.
# ----------------------------------------------------------------------------
def _hdot(a, b):
    return jnp.dot(a, b, precision=jax.lax.Precision.HIGHEST)


def _gru_cell_ref(x_t, h, wih, whh, bih, bhh):
    r = jax.nn.sigmoid(_hdot(x_t, wih[0]) + bih[0] + _hdot(h, whh[0]) + bhh[0])
    z = jax.nn.sigmoid(_hdot(x_t, wih[1]) + bih[1] + _hdot(h, whh[1]) + bhh[1])
    n = jnp.tanh(_hdot(x_t, wih[2]) + bih[2] + r * (_hdot(h, whh[2]) + bhh[2]))
    return (1.0 - z) * n + z * h


def _bigru_ref(x, p):
    T, B, _ = x.shape
    H = p["whh_f"].shape[-1]
    hf = jnp.zeros((B, H), jnp.float32)
    hb = jnp.zeros((B, H), jnp.float32)
    out_f, out_b = [], [None] * T
    for t in range(T):
        hf = _gru_cell_ref(x[t], hf, p["wih_f"], p["whh_f"],
                           p["bih_f"], p["bhh_f"])
        out_f.append(hf)
    for t in range(T - 1, -1, -1):
        hb = _gru_cell_ref(x[t], hb, p["wih_b"], p["whh_b"],
                           p["bih_b"], p["bhh_b"])
        out_b[t] = hb
    return jnp.stack(out_f, 0), jnp.stack(out_b, 0)


def vtae_forward_ref(x, noise, params, max_seq):
    out_f, out_b = _bigru_ref(x, params["en_gru"])
    zf = jnp.maximum(out_f[:, -1, :], 0.0)
    zb = jnp.maximum(out_b[:, 0, :], 0.0)
    mean = _hdot(zf, params["en_d1"]["wf"]) + _hdot(zb, params["en_d1"]["wb"]) \
        + params["en_d1"]["b"]
    log_std = _hdot(zf, params["en_d2"]["wf"]) \
        + _hdot(zb, params["en_d2"]["wb"]) + params["en_d2"]["b"]
    z = mean + noise * jnp.exp(log_std)
    z_rep = jnp.repeat(z[:, None, :], max_seq, axis=1)
    dec_f, dec_b = _bigru_ref(z_rep, params["de_gru"])
    x_rec = (_hdot(jnp.maximum(dec_f, 0.0), params["de_d"]["wf"])
             + _hdot(jnp.maximum(dec_b, 0.0), params["de_d"]["wb"])
             + params["de_d"]["b"])
    return z, x_rec


# ----------------------------------------------------------------------------
if __name__ == "__main__":
    in_dim, hidden_dim, z_dim, max_seq = 16, 32, 8, 8
    T0, B1 = 8, 4  # x: (T0, B1, in_dim); GRU time axis = 0, batch axis = 1

    key = jax.random.PRNGKey(0)
    kx, knoise, kp = jax.random.split(key, 3)
    x = jax.random.normal(kx, (T0, B1, in_dim), jnp.float32)
    # deterministic stand-in for torch.randn(x.size(0), z_dim)
    noise = jax.random.normal(knoise, (T0, z_dim), jnp.float32)
    params = init_vtae_params(kp, in_dim, hidden_dim, z_dim)
    packed = pack_vtae_params(params)

    z, x_rec = vtae_forward(x, noise, packed, max_seq)
    jax.block_until_ready((z, x_rec))

    assert z.shape == (T0, z_dim)
    assert x_rec.shape == (T0, max_seq, in_dim)

    z_ref, x_rec_ref = vtae_forward_ref(x, noise, params, max_seq)
    np.testing.assert_allclose(np.asarray(z), np.asarray(z_ref),
                               rtol=1e-3, atol=1e-3)
    np.testing.assert_allclose(np.asarray(x_rec), np.asarray(x_rec_ref),
                               rtol=1e-3, atol=1e-3)
    assert bool(jnp.all(jnp.isfinite(z))) and bool(jnp.all(jnp.isfinite(x_rec)))

    print("KERNEL_OK")
</pallas_src>

<mosaic_0001>
module attributes {stable_mosaic.version = 11 : i64} {
  func.func @vtae_kernel(%arg0: memref<8x16xf32, #tpu.memory_space<vmem>>, %arg1: memref<8x16xf32, #tpu.memory_space<vmem>>, %arg2: memref<8x8xf32, #tpu.memory_space<vmem>>, %arg3: memref<32x192xf32, #tpu.memory_space<vmem>>, %arg4: memref<64x192xf32, #tpu.memory_space<vmem>>, %arg5: memref<1x192xf32, #tpu.memory_space<vmem>>, %arg6: memref<1x64xf32, #tpu.memory_space<vmem>>, %arg7: memref<16x192xf32, #tpu.memory_space<vmem>>, %arg8: memref<64x192xf32, #tpu.memory_space<vmem>>, %arg9: memref<1x192xf32, #tpu.memory_space<vmem>>, %arg10: memref<1x64xf32, #tpu.memory_space<vmem>>, %arg11: memref<64x16xf32, #tpu.memory_space<vmem>>, %arg12: memref<1x16xf32, #tpu.memory_space<vmem>>, %arg13: memref<64x16xf32, #tpu.memory_space<vmem>>, %arg14: memref<1x16xf32, #tpu.memory_space<vmem>>, %arg15: memref<8x8xf32, #tpu.memory_space<vmem>>, %arg16: memref<8x16xf32, #tpu.memory_space<vmem>>, %arg17: memref<8x64xf32, #tpu.memory_space<vmem>>, %arg18: memref<8x64xf32, #tpu.memory_space<vmem>>) attributes {dimension_semantics = [], scalar_prefetch = 0 : i64, scratch_operands = 2 : i64, tpu.core_type = #tpu.core_type<tc>} {
    %c0 = arith.constant 0 : index
    %c0_0 = arith.constant 0 : index
    %0 = vector.load %arg0[%c0, %c0_0] : memref<8x16xf32, #tpu.memory_space<vmem>>, vector<8x16xf32>
    %c0_1 = arith.constant 0 : index
    %c0_2 = arith.constant 0 : index
    %1 = vector.load %arg1[%c0_1, %c0_2] : memref<8x16xf32, #tpu.memory_space<vmem>>, vector<8x16xf32>
    %2 = tpu.concatenate %0, %1 in 1 : vector<8x16xf32>, vector<8x16xf32> -> vector<8x32xf32>
    %c0_3 = arith.constant 0 : index
    %c0_4 = arith.constant 0 : index
    %3 = vector.load %arg3[%c0_3, %c0_4] : memref<32x192xf32, #tpu.memory_space<vmem>>, vector<32x192xf32>
    %cst = arith.constant dense<0.000000e+00> : vector<8x192xf32>
    %4 = tpu.matmul %2, %3, %cst {dimension_numbers = #tpu.dot_dimension_numbers<[1], [0], [0], [1], [0, 0, 1, 1], [], []>} : vector<8x32xf32>, vector<32x192xf32>, vector<8x192xf32> -> vector<8x192xf32>
    %c0_5 = arith.constant 0 : index
    %c0_6 = arith.constant 0 : index
    %5 = vector.load %arg5[%c0_5, %c0_6] : memref<1x192xf32, #tpu.memory_space<vmem>>, vector<1x192xf32>
    %6 = vector.broadcast %5 : vector<1x192xf32> to vector<8x192xf32>
    %7 = arith.addf %4, %6 : vector<8x192xf32>
    %c0_7 = arith.constant 0 : index
    %c0_8 = arith.constant 0 : index
    %8 = vector.load %arg4[%c0_7, %c0_8] : memref<64x192xf32, #tpu.memory_space<vmem>>, vector<64x192xf32>
    %c0_9 = arith.constant 0 : index
    %c0_10 = arith.constant 0 : index
    %9 = vector.load %arg6[%c0_9, %c0_10] : memref<1x64xf32, #tpu.memory_space<vmem>>, vector<1x64xf32>
    %cst_11 = arith.constant 0.000000e+00 : f32
    %10 = vector.broadcast %cst_11 : f32 to vector<1x64xf32>
    %cst_12 = arith.constant dense<0.000000e+00> : vector<1x192xf32>
    %11 = tpu.matmul %10, %8, %cst_12 {dimension_numbers = #tpu.dot_dimension_numbers<[1], [0], [0], [1], [0, 0, 1, 1], [], []>} : vector<1x64xf32>, vector<64x192xf32>, vector<1x192xf32> -> vector<1x192xf32>
    %12 = vector.extract_strided_slice %7 {offsets = [0, 0], sizes = [1, 192], strides = [1, 1]} : vector<8x192xf32> to vector<1x192xf32>
    %13 = vector.extract_strided_slice %12 {offsets = [0, 0], sizes = [1, 128], strides = [1, 1]} : vector<1x192xf32> to vector<1x128xf32>
    %14 = vector.extract_strided_slice %11 {offsets = [0, 0], sizes = [1, 128], strides = [1, 1]} : vector<1x192xf32> to vector<1x128xf32>
    %15 = arith.addf %13, %14 : vector<1x128xf32>
    %cst_13 = arith.constant 0.000000e+00 : f32
    %16 = vector.broadcast %cst_13 : f32 to vector<1x128xf32>
    %17 = arith.subf %16, %15 : vector<1x128xf32>
    %18 = math.exp %17 : vector<1x128xf32>
    %cst_14 = arith.constant 1.000000e+00 : f32
    %19 = vector.broadcast %cst_14 : f32 to vector<1x128xf32>
    %20 = arith.addf %19, %18 : vector<1x128xf32>
    %cst_15 = arith.constant 1.000000e+00 : f32
    %21 = vector.broadcast %cst_15 : f32 to vector<1x128xf32>
    %22 = arith.divf %21, %20 : vector<1x128xf32>
    %23 = vector.extract_strided_slice %22 {offsets = [0, 0], sizes = [1, 64], strides = [1, 1]} : vector<1x128xf32> to vector<1x64xf32>
    %24 = vector.extract_strided_slice %22 {offsets = [0, 64], sizes = [1, 64], strides = [1, 1]} : vector<1x128xf32> to vector<1x64xf32>
    %25 = vector.extract_strided_slice %12 {offsets = [0, 128], sizes = [1, 64], strides = [1, 1]} : vector<1x192xf32> to vector<1x64xf32>
    %26 = vector.extract_strided_slice %11 {offsets = [0, 128], sizes = [1, 64], strides = [1, 1]} : vector<1x192xf32> to vector<1x64xf32>
    %27 = arith.addf %26, %9 : vector<1x64xf32>
    %28 = arith.mulf %23, %27 : vector<1x64xf32>
    %29 = arith.addf %25, %28 : vector<1x64xf32>
    %30 = math.tanh %29 : vector<1x64xf32>
    %cst_16 = arith.constant 1.000000e+00 : f32
    %31 = vector.broadcast %cst_16 : f32 to vector<1x64xf32>
    %32 = arith.subf %31, %24 : vector<1x64xf32>
    %33 = arith.mulf %32, %30 : vector<1x64xf32>
    %34 = arith.mulf %24, %10 : vector<1x64xf32>
    %35 = arith.addf %33, %34 : vector<1x64xf32>
    %36 = vector.extract_strided_slice %35 {offsets = [0, 0], sizes = [1, 32], strides = [1, 1]} : vector<1x64xf32> to vector<1x32xf32>
    %c0_17 = arith.constant 0 : index
    %c0_18 = arith.constant 0 : index
    %37 = vector.load %arg17[%c0_17, %c0_18] : memref<8x64xf32, #tpu.memory_space<vmem>>, vector<1x32xf32>
    tpu.vector_store %arg17[%c0_17, %c0_18], %36 {strides = array<i32>} : memref<8x64xf32, #tpu.memory_space<vmem>>, vector<1x32xf32>,
    %38 = vector.extract_strided_slice %35 {offsets = [0, 32], sizes = [1, 32], strides = [1, 1]} : vector<1x64xf32> to vector<1x32xf32>
    %c7 = arith.constant 7 : index
    %c32 = arith.constant 32 : index
    %39 = vector.load %arg17[%c7, %c32] : memref<8x64xf32, #tpu.memory_space<vmem>>, vector<1x32xf32>
    tpu.vector_store %arg17[%c7, %c32], %38 {strides = array<i32>} : memref<8x64xf32, #tpu.memory_space<vmem>>, vector<1x32xf32>,
    %cst_19 = arith.constant dense<0.000000e+00> : vector<1x192xf32>
    %40 = tpu.matmul %35, %8, %cst_19 {dimension_numbers = #tpu.dot_dimension_numbers<[1], [0], [0], [1], [0, 0, 1, 1], [], []>} : vector<1x64xf32>, vector<64x192xf32>, vector<1x192xf32> -> vector<1x192xf32>
    %41 = vector.extract_strided_slice %7 {offsets = [1, 0], sizes = [1, 192], strides = [1, 1]} : vector<8x192xf32> to vector<1x192xf32>
    %42 = vector.extract_strided_slice %41 {offsets = [0, 0], sizes = [1, 128], strides = [1, 1]} : vector<1x192xf32> to vector<1x128xf32>
    %43 = vector.extract_strided_slice %40 {offsets = [0, 0], sizes = [1, 128], strides = [1, 1]} : vector<1x192xf32> to vector<1x128xf32>
    %44 = arith.addf %42, %43 : vector<1x128xf32>
    %cst_20 = arith.constant 0.000000e+00 : f32
    %45 = vector.broadcast %cst_20 : f32 to vector<1x128xf32>
    %46 = arith.subf %45, %44 : vector<1x128xf32>
    %47 = math.exp %46 : vector<1x128xf32>
    %cst_21 = arith.constant 1.000000e+00 : f32
    %48 = vector.broadcast %cst_21 : f32 to vector<1x128xf32>
    %49 = arith.addf %48, %47 : vector<1x128xf32>
    %cst_22 = arith.constant 1.000000e+00 : f32
    %50 = vector.broadcast %cst_22 : f32 to vector<1x128xf32>
    %51 = arith.divf %50, %49 : vector<1x128xf32>
    %52 = vector.extract_strided_slice %51 {offsets = [0, 0], sizes = [1, 64], strides = [1, 1]} : vector<1x128xf32> to vector<1x64xf32>
    %53 = vector.extract_strided_slice %51 {offsets = [0, 64], sizes = [1, 64], strides = [1, 1]} : vector<1x128xf32> to vector<1x64xf32>
    %54 = vector.extract_strided_slice %41 {offsets = [0, 128], sizes = [1, 64], strides = [1, 1]} : vector<1x192xf32> to vector<1x64xf32>
    %55 = vector.extract_strided_slice %40 {offsets = [0, 128], sizes = [1, 64], strides = [1, 1]} : vector<1x192xf32> to vector<1x64xf32>
    %56 = arith.addf %55, %9 : vector<1x64xf32>
    %57 = arith.mulf %52, %56 : vector<1x64xf32>
    %58 = arith.addf %54, %57 : vector<1x64xf32>
    %59 = math.tanh %58 : vector<1x64xf32>
    %cst_23 = arith.constant 1.000000e+00 : f32
    %60 = vector.broadcast %cst_23 : f32 to vector<1x64xf32>
    %61 = arith.subf %60, %53 : vector<1x64xf32>
    %62 = arith.mulf %61, %59 : vector<1x64xf32>
    %63 = arith.mulf %53, %35 : vector<1x64xf32>
    %64 = arith.addf %62, %63 : vector<1x64xf32>
    %65 = vector.extract_strided_slice %64 {offsets = [0, 0], sizes = [1, 32], strides = [1, 1]} : vector<1x64xf32> to vector<1x32xf32>
    %c1 = arith.constant 1 : index
    %c0_24 = arith.constant 0 : index
    %66 = vector.load %arg17[%c1, %c0_24] : memref<8x64xf32, #tpu.memory_space<vmem>>, vector<1x32xf32>
    tpu.vector_store %arg17[%c1, %c0_24], %65 {strides = array<i32>} : memref<8x64xf32, #tpu.memory_space<vmem>>, vector<1x32xf32>,
    %67 = vector.extract_strided_slice %64 {offsets = [0, 32], sizes = [1, 32], strides = [1, 1]} : vector<1x64xf32> to vector<1x32xf32>
    %c6 = arith.constant 6 : index
    %c32_25 = arith.constant 32 : index
    %68 = vector.load %arg17[%c6, %c32_25] : memref<8x64xf32, #tpu.memory_space<vmem>>, vector<1x32xf32>
    tpu.vector_store %arg17[%c6, %c32_25], %67 {strides = array<i32>} : memref<8x64xf32, #tpu.memory_space<vmem>>, vector<1x32xf32>,
    %cst_26 = arith.constant dense<0.000000e+00> : vector<1x192xf32>
    %69 = tpu.matmul %64, %8, %cst_26 {dimension_numbers = #tpu.dot_dimension_numbers<[1], [0], [0], [1], [0, 0, 1, 1], [], []>} : vector<1x64xf32>, vector<64x192xf32>, vector<1x192xf32> -> vector<1x192xf32>
    %70 = vector.extract_strided_slice %7 {offsets = [2, 0], sizes = [1, 192], strides = [1, 1]} : vector<8x192xf32> to vector<1x192xf32>
    %71 = vector.extract_strided_slice %70 {offsets = [0, 0], sizes = [1, 128], strides = [1, 1]} : vector<1x192xf32> to vector<1x128xf32>
    %72 = vector.extract_strided_slice %69 {offsets = [0, 0], sizes = [1, 128], strides = [1, 1]} : vector<1x192xf32> to vector<1x128xf32>
    %73 = arith.addf %71, %72 : vector<1x128xf32>
    %cst_27 = arith.constant 0.000000e+00 : f32
    %74 = vector.broadcast %cst_27 : f32 to vector<1x128xf32>
    %75 = arith.subf %74, %73 : vector<1x128xf32>
    %76 = math.exp %75 : vector<1x128xf32>
    %cst_28 = arith.constant 1.000000e+00 : f32
    %77 = vector.broadcast %cst_28 : f32 to vector<1x128xf32>
    %78 = arith.addf %77, %76 : vector<1x128xf32>
    %cst_29 = arith.constant 1.000000e+00 : f32
    %79 = vector.broadcast %cst_29 : f32 to vector<1x128xf32>
    %80 = arith.divf %79, %78 : vector<1x128xf32>
    %81 = vector.extract_strided_slice %80 {offsets = [0, 0], sizes = [1, 64], strides = [1, 1]} : vector<1x128xf32> to vector<1x64xf32>
    %82 = vector.extract_strided_slice %80 {offsets = [0, 64], sizes = [1, 64], strides = [1, 1]} : vector<1x128xf32> to vector<1x64xf32>
    %83 = vector.extract_strided_slice %70 {offsets = [0, 128], sizes = [1, 64], strides = [1, 1]} : vector<1x192xf32> to vector<1x64xf32>
    %84 = vector.extract_strided_slice %69 {offsets = [0, 128], sizes = [1, 64], strides = [1, 1]} : vector<1x192xf32> to vector<1x64xf32>
    %85 = arith.addf %84, %9 : vector<1x64xf32>
    %86 = arith.mulf %81, %85 : vector<1x64xf32>
    %87 = arith.addf %83, %86 : vector<1x64xf32>
    %88 = math.tanh %87 : vector<1x64xf32>
    %cst_30 = arith.constant 1.000000e+00 : f32
    %89 = vector.broadcast %cst_30 : f32 to vector<1x64xf32>
    %90 = arith.subf %89, %82 : vector<1x64xf32>
    %91 = arith.mulf %90, %88 : vector<1x64xf32>
    %92 = arith.mulf %82, %64 : vector<1x64xf32>
    %93 = arith.addf %91, %92 : vector<1x64xf32>
    %94 = vector.extract_strided_slice %93 {offsets = [0, 0], sizes = [1, 32], strides = [1, 1]} : vector<1x64xf32> to vector<1x32xf32>
    %c2 = arith.constant 2 : index
    %c0_31 = arith.constant 0 : index
    %95 = vector.load %arg17[%c2, %c0_31] : memref<8x64xf32, #tpu.memory_space<vmem>>, vector<1x32xf32>
    tpu.vector_store %arg17[%c2, %c0_31], %94 {strides = array<i32>} : memref<8x64xf32, #tpu.memory_space<vmem>>, vector<1x32xf32>,
    %96 = vector.extract_strided_slice %93 {offsets = [0, 32], sizes = [1, 32], strides = [1, 1]} : vector<1x64xf32> to vector<1x32xf32>
    %c5 = arith.constant 5 : index
    %c32_32 = arith.constant 32 : index
    %97 = vector.load %arg17[%c5, %c32_32] : memref<8x64xf32, #tpu.memory_space<vmem>>, vector<1x32xf32>
    tpu.vector_store %arg17[%c5, %c32_32], %96 {strides = array<i32>} : memref<8x64xf32, #tpu.memory_space<vmem>>, vector<1x32xf32>,
    %cst_33 = arith.constant dense<0.000000e+00> : vector<1x192xf32>
    %98 = tpu.matmul %93, %8, %cst_33 {dimension_numbers = #tpu.dot_dimension_numbers<[1], [0], [0], [1], [0, 0, 1, 1], [], []>} : vector<1x64xf32>, vector<64x192xf32>, vector<1x192xf32> -> vector<1x192xf32>
    %99 = vector.extract_strided_slice %7 {offsets = [3, 0], sizes = [1, 192], strides = [1, 1]} : vector<8x192xf32> to vector<1x192xf32>
    %100 = vector.extract_strided_slice %99 {offsets = [0, 0], sizes = [1, 128], strides = [1, 1]} : vector<1x192xf32> to vector<1x128xf32>
    %101 = vector.extract_strided_slice %98 {offsets = [0, 0], sizes = [1, 128], strides = [1, 1]} : vector<1x192xf32> to vector<1x128xf32>
    %102 = arith.addf %100, %101 : vector<1x128xf32>
    %cst_34 = arith.constant 0.000000e+00 : f32
    %103 = vector.broadcast %cst_34 : f32 to vector<1x128xf32>
    %104 = arith.subf %103, %102 : vector<1x128xf32>
    %105 = math.exp %104 : vector<1x128xf32>
    %cst_35 = arith.constant 1.000000e+00 : f32
    %106 = vector.broadcast %cst_35 : f32 to vector<1x128xf32>
    %107 = arith.addf %106, %105 : vector<1x128xf32>
    %cst_36 = arith.constant 1.000000e+00 : f32
    %108 = vector.broadcast %cst_36 : f32 to vector<1x128xf32>
    %109 = arith.divf %108, %107 : vector<1x128xf32>
    %110 = vector.extract_strided_slice %109 {offsets = [0, 0], sizes = [1, 64], strides = [1, 1]} : vector<1x128xf32> to vector<1x64xf32>
    %111 = vector.extract_strided_slice %109 {offsets = [0, 64], sizes = [1, 64], strides = [1, 1]} : vector<1x128xf32> to vector<1x64xf32>
    %112 = vector.extract_strided_slice %99 {offsets = [0, 128], sizes = [1, 64], strides = [1, 1]} : vector<1x192xf32> to vector<1x64xf32>
    %113 = vector.extract_strided_slice %98 {offsets = [0, 128], sizes = [1, 64], strides = [1, 1]} : vector<1x192xf32> to vector<1x64xf32>
    %114 = arith.addf %113, %9 : vector<1x64xf32>
    %115 = arith.mulf %110, %114 : vector<1x64xf32>
    %116 = arith.addf %112, %115 : vector<1x64xf32>
    %117 = math.tanh %116 : vector<1x64xf32>
    %cst_37 = arith.constant 1.000000e+00 : f32
    %118 = vector.broadcast %cst_37 : f32 to vector<1x64xf32>
    %119 = arith.subf %118, %111 : vector<1x64xf32>
    %120 = arith.mulf %119, %117 : vector<1x64xf32>
    %121 = arith.mulf %111, %93 : vector<1x64xf32>
    %122 = arith.addf %120, %121 : vector<1x64xf32>
    %123 = vector.extract_strided_slice %122 {offsets = [0, 0], sizes = [1, 32], strides = [1, 1]} : vector<1x64xf32> to vector<1x32xf32>
    %c3 = arith.constant 3 : index
    %c0_38 = arith.constant 0 : index
    %124 = vector.load %arg17[%c3, %c0_38] : memref<8x64xf32, #tpu.memory_space<vmem>>, vector<1x32xf32>
    tpu.vector_store %arg17[%c3, %c0_38], %123 {strides = array<i32>} : memref<8x64xf32, #tpu.memory_space<vmem>>, vector<1x32xf32>,
    %125 = vector.extract_strided_slice %122 {offsets = [0, 32], sizes = [1, 32], strides = [1, 1]} : vector<1x64xf32> to vector<1x32xf32>
    %c4 = arith.constant 4 : index
    %c32_39 = arith.constant 32 : index
    %126 = vector.load %arg17[%c4, %c32_39] : memref<8x64xf32, #tpu.memory_space<vmem>>, vector<1x32xf32>
    tpu.vector_store %arg17[%c4, %c32_39], %125 {strides = array<i32>} : memref<8x64xf32, #tpu.memory_space<vmem>>, vector<1x32xf32>,
    %cst_40 = arith.constant dense<0.000000e+00> : vector<1x192xf32>
    %127 = tpu.matmul %122, %8, %cst_40 {dimension_numbers = #tpu.dot_dimension_numbers<[1], [0], [0], [1], [0, 0, 1, 1], [], []>} : vector<1x64xf32>, vector<64x192xf32>, vector<1x192xf32> -> vector<1x192xf32>
    %128 = vector.extract_strided_slice %7 {offsets = [4, 0], sizes = [1, 192], strides = [1, 1]} : vector<8x192xf32> to vector<1x192xf32>
    %129 = vector.extract_strided_slice %128 {offsets = [0, 0], sizes = [1, 128], strides = [1, 1]} : vector<1x192xf32> to vector<1x128xf32>
    %130 = vector.extract_strided_slice %127 {offsets = [0, 0], sizes = [1, 128], strides = [1, 1]} : vector<1x192xf32> to vector<1x128xf32>
    %131 = arith.addf %129, %130 : vector<1x128xf32>
    %cst_41 = arith.constant 0.000000e+00 : f32
    %132 = vector.broadcast %cst_41 : f32 to vector<1x128xf32>
    %133 = arith.subf %132, %131 : vector<1x128xf32>
    %134 = math.exp %133 : vector<1x128xf32>
    %cst_42 = arith.constant 1.000000e+00 : f32
    %135 = vector.broadcast %cst_42 : f32 to vector<1x128xf32>
    %136 = arith.addf %135, %134 : vector<1x128xf32>
    %cst_43 = arith.constant 1.000000e+00 : f32
    %137 = vector.broadcast %cst_43 : f32 to vector<1x128xf32>
    %138 = arith.divf %137, %136 : vector<1x128xf32>
    %139 = vector.extract_strided_slice %138 {offsets = [0, 0], sizes = [1, 64], strides = [1, 1]} : vector<1x128xf32> to vector<1x64xf32>
    %140 = vector.extract_strided_slice %138 {offsets = [0, 64], sizes = [1, 64], strides = [1, 1]} : vector<1x128xf32> to vector<1x64xf32>
    %141 = vector.extract_strided_slice %128 {offsets = [0, 128], sizes = [1, 64], strides = [1, 1]} : vector<1x192xf32> to vector<1x64xf32>
    %142 = vector.extract_strided_slice %127 {offsets = [0, 128], sizes = [1, 64], strides = [1, 1]} : vector<1x192xf32> to vector<1x64xf32>
    %143 = arith.addf %142, %9 : vector<1x64xf32>
    %144 = arith.mulf %139, %143 : vector<1x64xf32>
    %145 = arith.addf %141, %144 : vector<1x64xf32>
    %146 = math.tanh %145 : vector<1x64xf32>
    %cst_44 = arith.constant 1.000000e+00 : f32
    %147 = vector.broadcast %cst_44 : f32 to vector<1x64xf32>
    %148 = arith.subf %147, %140 : vector<1x64xf32>
    %149 = arith.mulf %148, %146 : vector<1x64xf32>
    %150 = arith.mulf %140, %122 : vector<1x64xf32>
    %151 = arith.addf %149, %150 : vector<1x64xf32>
    %152 = vector.extract_strided_slice %151 {offsets = [0, 0], sizes = [1, 32], strides = [1, 1]} : vector<1x64xf32> to vector<1x32xf32>
    %c4_45 = arith.constant 4 : index
    %c0_46 = arith.constant 0 : index
    %153 = vector.load %arg17[%c4_45, %c0_46] : memref<8x64xf32, #tpu.memory_space<vmem>>, vector<1x32xf32>
    tpu.vector_store %arg17[%c4_45, %c0_46], %152 {strides = array<i32>} : memref<8x64xf32, #tpu.memory_space<vmem>>, vector<1x32xf32>,
    %154 = vector.extract_strided_slice %151 {offsets = [0, 32], sizes = [1, 32], strides = [1, 1]} : vector<1x64xf32> to vector<1x32xf32>
    %c3_47 = arith.constant 3 : index
    %c32_48 = arith.constant 32 : index
    %155 = vector.load %arg17[%c3_47, %c32_48] : memref<8x64xf32, #tpu.memory_space<vmem>>, vector<1x32xf32>
    tpu.vector_store %arg17[%c3_47, %c32_48], %154 {strides = array<i32>} : memref<8x64xf32, #tpu.memory_space<vmem>>, vector<1x32xf32>,
    %cst_49 = arith.constant dense<0.000000e+00> : vector<1x192xf32>
    %156 = tpu.matmul %151, %8, %cst_49 {dimension_numbers = #tpu.dot_dimension_numbers<[1], [0], [0], [1], [0, 0, 1, 1], [], []>} : vector<1x64xf32>, vector<64x192xf32>, vector<1x192xf32> -> vector<1x192xf32>
    %157 = vector.extract_strided_slice %7 {offsets = [5, 0], sizes = [1, 192], strides = [1, 1]} : vector<8x192xf32> to vector<1x192xf32>
    %158 = vector.extract_strided_slice %157 {offsets = [0, 0], sizes = [1, 128], strides = [1, 1]} : vector<1x192xf32> to vector<1x128xf32>
    %159 = vector.extract_strided_slice %156 {offsets = [0, 0], sizes = [1, 128], strides = [1, 1]} : vector<1x192xf32> to vector<1x128xf32>
    %160 = arith.addf %158, %159 : vector<1x128xf32>
    %cst_50 = arith.constant 0.000000e+00 : f32
    %161 = vector.broadcast %cst_50 : f32 to vector<1x128xf32>
    %162 = arith.subf %161, %160 : vector<1x128xf32>
    %163 = math.exp %162 : vector<1x128xf32>
    %cst_51 = arith.constant 1.000000e+00 : f32
    %164 = vector.broadcast %cst_51 : f32 to vector<1x128xf32>
    %165 = arith.addf %164, %163 : vector<1x128xf32>
    %cst_52 = arith.constant 1.000000e+00 : f32
    %166 = vector.broadcast %cst_52 : f32 to vector<1x128xf32>
    %167 = arith.divf %166, %165 : vector<1x128xf32>
    %168 = vector.extract_strided_slice %167 {offsets = [0, 0], sizes = [1, 64], strides = [1, 1]} : vector<1x128xf32> to vector<1x64xf32>
    %169 = vector.extract_strided_slice %167 {offsets = [0, 64], sizes = [1, 64], strides = [1, 1]} : vector<1x128xf32> to vector<1x64xf32>
    %170 = vector.extract_strided_slice %157 {offsets = [0, 128], sizes = [1, 64], strides = [1, 1]} : vector<1x192xf32> to vector<1x64xf32>
    %171 = vector.extract_strided_slice %156 {offsets = [0, 128], sizes = [1, 64], strides = [1, 1]} : vector<1x192xf32> to vector<1x64xf32>
    %172 = arith.addf %171, %9 : vector<1x64xf32>
    %173 = arith.mulf %168, %172 : vector<1x64xf32>
    %174 = arith.addf %170, %173 : vector<1x64xf32>
    %175 = math.tanh %174 : vector<1x64xf32>
    %cst_53 = arith.constant 1.000000e+00 : f32
    %176 = vector.broadcast %cst_53 : f32 to vector<1x64xf32>
    %177 = arith.subf %176, %169 : vector<1x64xf32>
    %178 = arith.mulf %177, %175 : vector<1x64xf32>
    %179 = arith.mulf %169, %151 : vector<1x64xf32>
    %180 = arith.addf %178, %179 : vector<1x64xf32>
    %181 = vector.extract_strided_slice %180 {offsets = [0, 0], sizes = [1, 32], strides = [1, 1]} : vector<1x64xf32> to vector<1x32xf32>
    %c5_54 = arith.constant 5 : index
    %c0_55 = arith.constant 0 : index
    %182 = vector.load %arg17[%c5_54, %c0_55] : memref<8x64xf32, #tpu.memory_space<vmem>>, vector<1x32xf32>
    tpu.vector_store %arg17[%c5_54, %c0_55], %181 {strides = array<i32>} : memref<8x64xf32, #tpu.memory_space<vmem>>, vector<1x32xf32>,
    %183 = vector.extract_strided_slice %180 {offsets = [0, 32], sizes = [1, 32], strides = [1, 1]} : vector<1x64xf32> to vector<1x32xf32>
    %c2_56 = arith.constant 2 : index
    %c32_57 = arith.constant 32 : index
    %184 = vector.load %arg17[%c2_56, %c32_57] : memref<8x64xf32, #tpu.memory_space<vmem>>, vector<1x32xf32>
    tpu.vector_store %arg17[%c2_56, %c32_57], %183 {strides = array<i32>} : memref<8x64xf32, #tpu.memory_space<vmem>>, vector<1x32xf32>,
    %cst_58 = arith.constant dense<0.000000e+00> : vector<1x192xf32>
    %185 = tpu.matmul %180, %8, %cst_58 {dimension_numbers = #tpu.dot_dimension_numbers<[1], [0], [0], [1], [0, 0, 1, 1], [], []>} : vector<1x64xf32>, vector<64x192xf32>, vector<1x192xf32> -> vector<1x192xf32>
    %186 = vector.extract_strided_slice %7 {offsets = [6, 0], sizes = [1, 192], strides = [1, 1]} : vector<8x192xf32> to vector<1x192xf32>
    %187 = vector.extract_strided_slice %186 {offsets = [0, 0], sizes = [1, 128], strides = [1, 1]} : vector<1x192xf32> to vector<1x128xf32>
    %188 = vector.extract_strided_slice %185 {offsets = [0, 0], sizes = [1, 128], strides = [1, 1]} : vector<1x192xf32> to vector<1x128xf32>
    %189 = arith.addf %187, %188 : vector<1x128xf32>
    %cst_59 = arith.constant 0.000000e+00 : f32
    %190 = vector.broadcast %cst_59 : f32 to vector<1x128xf32>
    %191 = arith.subf %190, %189 : vector<1x128xf32>
    %192 = math.exp %191 : vector<1x128xf32>
    %cst_60 = arith.constant 1.000000e+00 : f32
    %193 = vector.broadcast %cst_60 : f32 to vector<1x128xf32>
    %194 = arith.addf %193, %192 : vector<1x128xf32>
    %cst_61 = arith.constant 1.000000e+00 : f32
    %195 = vector.broadcast %cst_61 : f32 to vector<1x128xf32>
    %196 = arith.divf %195, %194 : vector<1x128xf32>
    %197 = vector.extract_strided_slice %196 {offsets = [0, 0], sizes = [1, 64], strides = [1, 1]} : vector<1x128xf32> to vector<1x64xf32>
    %198 = vector.extract_strided_slice %196 {offsets = [0, 64], sizes = [1, 64], strides = [1, 1]} : vector<1x128xf32> to vector<1x64xf32>
    %199 = vector.extract_strided_slice %186 {offsets = [0, 128], sizes = [1, 64], strides = [1, 1]} : vector<1x192xf32> to vector<1x64xf32>
    %200 = vector.extract_strided_slice %185 {offsets = [0, 128], sizes = [1, 64], strides = [1, 1]} : vector<1x192xf32> to vector<1x64xf32>
    %201 = arith.addf %200, %9 : vector<1x64xf32>
    %202 = arith.mulf %197, %201 : vector<1x64xf32>
    %203 = arith.addf %199, %202 : vector<1x64xf32>
    %204 = math.tanh %203 : vector<1x64xf32>
    %cst_62 = arith.constant 1.000000e+00 : f32
    %205 = vector.broadcast %cst_62 : f32 to vector<1x64xf32>
    %206 = arith.subf %205, %198 : vector<1x64xf32>
    %207 = arith.mulf %206, %204 : vector<1x64xf32>
    %208 = arith.mulf %198, %180 : vector<1x64xf32>
    %209 = arith.addf %207, %208 : vector<1x64xf32>
    %210 = vector.extract_strided_slice %209 {offsets = [0, 0], sizes = [1, 32], strides = [1, 1]} : vector<1x64xf32> to vector<1x32xf32>
    %c6_63 = arith.constant 6 : index
    %c0_64 = arith.constant 0 : index
    %211 = vector.load %arg17[%c6_63, %c0_64] : memref<8x64xf32, #tpu.memory_space<vmem>>, vector<1x32xf32>
    tpu.vector_store %arg17[%c6_63, %c0_64], %210 {strides = array<i32>} : memref<8x64xf32, #tpu.memory_space<vmem>>, vector<1x32xf32>,
    %212 = vector.extract_strided_slice %209 {offsets = [0, 32], sizes = [1, 32], strides = [1, 1]} : vector<1x64xf32> to vector<1x32xf32>
    %c1_65 = arith.constant 1 : index
    %c32_66 = arith.constant 32 : index
    %213 = vector.load %arg17[%c1_65, %c32_66] : memref<8x64xf32, #tpu.memory_space<vmem>>, vector<1x32xf32>
    tpu.vector_store %arg17[%c1_65, %c32_66], %212 {strides = array<i32>} : memref<8x64xf32, #tpu.memory_space<vmem>>, vector<1x32xf32>,
    %cst_67 = arith.constant dense<0.000000e+00> : vector<1x192xf32>
    %214 = tpu.matmul %209, %8, %cst_67 {dimension_numbers = #tpu.dot_dimension_numbers<[1], [0], [0], [1], [0, 0, 1, 1], [], []>} : vector<1x64xf32>, vector<64x192xf32>, vector<1x192xf32> -> vector<1x192xf32>
    %215 = vector.extract_strided_slice %7 {offsets = [7, 0], sizes = [1, 192], strides = [1, 1]} : vector<8x192xf32> to vector<1x192xf32>
    %216 = vector.extract_strided_slice %215 {offsets = [0, 0], sizes = [1, 128], strides = [1, 1]} : vector<1x192xf32> to vector<1x128xf32>
    %217 = vector.extract_strided_slice %214 {offsets = [0, 0], sizes = [1, 128], strides = [1, 1]} : vector<1x192xf32> to vector<1x128xf32>
    %218 = arith.addf %216, %217 : vector<1x128xf32>
    %cst_68 = arith.constant 0.000000e+00 : f32
    %219 = vector.broadcast %cst_68 : f32 to vector<1x128xf32>
    %220 = arith.subf %219, %218 : vector<1x128xf32>
    %221 = math.exp %220 : vector<1x128xf32>
    %cst_69 = arith.constant 1.000000e+00 : f32
    %222 = vector.broadcast %cst_69 : f32 to vector<1x128xf32>
    %223 = arith.addf %222, %221 : vector<1x128xf32>
    %cst_70 = arith.constant 1.000000e+00 : f32
    %224 = vector.broadcast %cst_70 : f32 to vector<1x128xf32>
    %225 = arith.divf %224, %223 : vector<1x128xf32>
    %226 = vector.extract_strided_slice %225 {offsets = [0, 0], sizes = [1, 64], strides = [1, 1]} : vector<1x128xf32> to vector<1x64xf32>
    %227 = vector.extract_strided_slice %225 {offsets = [0, 64], sizes = [1, 64], strides = [1, 1]} : vector<1x128xf32> to vector<1x64xf32>
    %228 = vector.extract_strided_slice %215 {offsets = [0, 128], sizes = [1, 64], strides = [1, 1]} : vector<1x192xf32> to vector<1x64xf32>
    %229 = vector.extract_strided_slice %214 {offsets = [0, 128], sizes = [1, 64], strides = [1, 1]} : vector<1x192xf32> to vector<1x64xf32>
    %230 = arith.addf %229, %9 : vector<1x64xf32>
    %231 = arith.mulf %226, %230 : vector<1x64xf32>
    %232 = arith.addf %228, %231 : vector<1x64xf32>
    %233 = math.tanh %232 : vector<1x64xf32>
    %cst_71 = arith.constant 1.000000e+00 : f32
    %234 = vector.broadcast %cst_71 : f32 to vector<1x64xf32>
    %235 = arith.subf %234, %227 : vector<1x64xf32>
    %236 = arith.mulf %235, %233 : vector<1x64xf32>
    %237 = arith.mulf %227, %209 : vector<1x64xf32>
    %238 = arith.addf %236, %237 : vector<1x64xf32>
    %239 = vector.extract_strided_slice %238 {offsets = [0, 0], sizes = [1, 32], strides = [1, 1]} : vector<1x64xf32> to vector<1x32xf32>
    %c7_72 = arith.constant 7 : index
    %c0_73 = arith.constant 0 : index
    %240 = vector.load %arg17[%c7_72, %c0_73] : memref<8x64xf32, #tpu.memory_space<vmem>>, vector<1x32xf32>
    tpu.vector_store %arg17[%c7_72, %c0_73], %239 {strides = array<i32>} : memref<8x64xf32, #tpu.memory_space<vmem>>, vector<1x32xf32>,
    %241 = vector.extract_strided_slice %238 {offsets = [0, 32], sizes = [1, 32], strides = [1, 1]} : vector<1x64xf32> to vector<1x32xf32>
    %c0_74 = arith.constant 0 : index
    %c32_75 = arith.constant 32 : index
    %242 = vector.load %arg17[%c0_74, %c32_75] : memref<8x64xf32, #tpu.memory_space<vmem>>, vector<1x32xf32>
    tpu.vector_store %arg17[%c0_74, %c32_75], %241 {strides = array<i32>} : memref<8x64xf32, #tpu.memory_space<vmem>>, vector<1x32xf32>,
    %c0_76 = arith.constant 0 : index
    %c0_77 = arith.constant 0 : index
    %243 = vector.load %arg17[%c0_76, %c0_77] : memref<8x64xf32, #tpu.memory_space<vmem>>, vector<8x64xf32>
    %cst_78 = arith.constant 0.000000e+00 : f32
    %244 = vector.broadcast %cst_78 : f32 to vector<8x64xf32>
    %245 = arith.maximumf %243, %244 : vector<8x64xf32>
    %c0_79 = arith.constant 0 : index
    %c0_80 = arith.constant 0 : index
    %246 = vector.load %arg11[%c0_79, %c0_80] : memref<64x16xf32, #tpu.memory_space<vmem>>, vector<64x16xf32>
    %cst_81 = arith.constant dense<0.000000e+00> : vector<8x16xf32>
    %247 = tpu.matmul %245, %246, %cst_81 {dimension_numbers = #tpu.dot_dimension_numbers<[1], [0], [0], [1], [0, 0, 1, 1], [], []>} : vector<8x64xf32>, vector<64x16xf32>, vector<8x16xf32> -> vector<8x16xf32>
    %c0_82 = arith.constant 0 : index
    %c0_83 = arith.constant 0 : index
    %248 = vector.load %arg12[%c0_82, %c0_83] : memref<1x16xf32, #tpu.memory_space<vmem>>, vector<1x16xf32>
    %249 = vector.broadcast %248 : vector<1x16xf32> to vector<8x16xf32>
    %250 = arith.addf %247, %249 : vector<8x16xf32>
    %251 = vector.extract_strided_slice %250 {offsets = [0, 0], sizes = [8, 8], strides = [1, 1]} : vector<8x16xf32> to vector<8x8xf32>
    %252 = vector.extract_strided_slice %250 {offsets = [0, 8], sizes = [8, 8], strides = [1, 1]} : vector<8x16xf32> to vector<8x8xf32>
    %c0_84 = arith.constant 0 : index
    %c0_85 = arith.constant 0 : index
    %253 = vector.load %arg2[%c0_84, %c0_85] : memref<8x8xf32, #tpu.memory_space<vmem>>, vector<8x8xf32>
    %254 = math.exp %252 : vector<8x8xf32>
    %255 = arith.mulf %253, %254 : vector<8x8xf32>
    %256 = arith.addf %251, %255 : vector<8x8xf32>
    %c0_86 = arith.constant 0 : index
    %c0_87 = arith.constant 0 : index
    %257 = vector.load %arg15[%c0_86, %c0_87] : memref<8x8xf32, #tpu.memory_space<vmem>>, vector<8x8xf32>
    tpu.vector_store %arg15[%c0_86, %c0_87], %256 {strides = array<i32>} : memref<8x8xf32, #tpu.memory_space<vmem>>, vector<8x8xf32>,
    %258 = vector.extract_strided_slice %256 {offsets = [7, 0], sizes = [1, 8], strides = [1, 1]} : vector<8x8xf32> to vector<1x8xf32>
    %259 = vector.extract_strided_slice %256 {offsets = [6, 0], sizes = [1, 8], strides = [1, 1]} : vector<8x8xf32> to vector<1x8xf32>
    %260 = vector.extract_strided_slice %256 {offsets = [5, 0], sizes = [1, 8], strides = [1, 1]} : vector<8x8xf32> to vector<1x8xf32>
    %261 = vector.extract_strided_slice %256 {offsets = [4, 0], sizes = [1, 8], strides = [1, 1]} : vector<8x8xf32> to vector<1x8xf32>
    %262 = vector.extract_strided_slice %256 {offsets = [3, 0], sizes = [1, 8], strides = [1, 1]} : vector<8x8xf32> to vector<1x8xf32>
    %263 = vector.extract_strided_slice %256 {offsets = [2, 0], sizes = [1, 8], strides = [1, 1]} : vector<8x8xf32> to vector<1x8xf32>
    %264 = vector.extract_strided_slice %256 {offsets = [1, 0], sizes = [1, 8], strides = [1, 1]} : vector<8x8xf32> to vector<1x8xf32>
    %265 = vector.extract_strided_slice %256 {offsets = [0, 0], sizes = [1, 8], strides = [1, 1]} : vector<8x8xf32> to vector<1x8xf32>
    %266 = tpu.concatenate %258, %259, %260, %261, %262, %263, %264, %265 in 0 : vector<1x8xf32>, vector<1x8xf32>, vector<1x8xf32>, vector<1x8xf32>, vector<1x8xf32>, vector<1x8xf32>, vector<1x8xf32>, vector<1x8xf32> -> vector<8x8xf32>
    %267 = tpu.concatenate %256, %266 in 1 : vector<8x8xf32>, vector<8x8xf32> -> vector<8x16xf32>
    %c0_88 = arith.constant 0 : index
    %c0_89 = arith.constant 0 : index
    %268 = vector.load %arg7[%c0_88, %c0_89] : memref<16x192xf32, #tpu.memory_space<vmem>>, vector<16x192xf32>
    %cst_90 = arith.constant dense<0.000000e+00> : vector<8x192xf32>
    %269 = tpu.matmul %267, %268, %cst_90 {dimension_numbers = #tpu.dot_dimension_numbers<[1], [0], [0], [1], [0, 0, 1, 1], [], []>} : vector<8x16xf32>, vector<16x192xf32>, vector<8x192xf32> -> vector<8x192xf32>
    %c0_91 = arith.constant 0 : index
    %c0_92 = arith.constant 0 : index
    %270 = vector.load %arg9[%c0_91, %c0_92] : memref<1x192xf32, #tpu.memory_space<vmem>>, vector<1x192xf32>
    %271 = vector.broadcast %270 : vector<1x192xf32> to vector<8x192xf32>
    %272 = arith.addf %269, %271 : vector<8x192xf32>
    %c0_93 = arith.constant 0 : index
    %c0_94 = arith.constant 0 : index
    %273 = vector.load %arg8[%c0_93, %c0_94] : memref<64x192xf32, #tpu.memory_space<vmem>>, vector<64x192xf32>
    %c0_95 = arith.constant 0 : index
    %c0_96 = arith.constant 0 : index
    %274 = vector.load %arg10[%c0_95, %c0_96] : memref<1x64xf32, #tpu.memory_space<vmem>>, vector<1x64xf32>
    %cst_97 = arith.constant 0.000000e+00 : f32
    %275 = vector.broadcast %cst_97 : f32 to vector<1x64xf32>
    %cst_98 = arith.constant dense<0.000000e+00> : vector<1x192xf32>
    %276 = tpu.matmul %275, %273, %cst_98 {dimension_numbers = #tpu.dot_dimension_numbers<[1], [0], [0], [1], [0, 0, 1, 1], [], []>} : vector<1x64xf32>, vector<64x192xf32>, vector<1x192xf32> -> vector<1x192xf32>
    %277 = vector.extract_strided_slice %272 {offsets = [0, 0], sizes = [1, 192], strides = [1, 1]} : vector<8x192xf32> to vector<1x192xf32>
    %278 = vector.extract_strided_slice %277 {offsets = [0, 0], sizes = [1, 128], strides = [1, 1]} : vector<1x192xf32> to vector<1x128xf32>
    %279 = vector.extract_strided_slice %276 {offsets = [0, 0], sizes = [1, 128], strides = [1, 1]} : vector<1x192xf32> to vector<1x128xf32>
    %280 = arith.addf %278, %279 : vector<1x128xf32>
    %cst_99 = arith.constant 0.000000e+00 : f32
    %281 = vector.broadcast %cst_99 : f32 to vector<1x128xf32>
    %282 = arith.subf %281, %280 : vector<1x128xf32>
    %283 = math.exp %282 : vector<1x128xf32>
    %cst_100 = arith.constant 1.000000e+00 : f32
    %284 = vector.broadcast %cst_100 : f32 to vector<1x128xf32>
    %285 = arith.addf %284, %283 : vector<1x128xf32>
    %cst_101 = arith.constant 1.000000e+00 : f32
    %286 = vector.broadcast %cst_101 : f32 to vector<1x128xf32>
    %287 = arith.divf %286, %285 : vector<1x128xf32>
    %288 = vector.extract_strided_slice %287 {offsets = [0, 0], sizes = [1, 64], strides = [1, 1]} : vector<1x128xf32> to vector<1x64xf32>
    %289 = vector.extract_strided_slice %287 {offsets = [0, 64], sizes = [1, 64], strides = [1, 1]} : vector<1x128xf32> to vector<1x64xf32>
    %290 = vector.extract_strided_slice %277 {offsets = [0, 128], sizes = [1, 64], strides = [1, 1]} : vector<1x192xf32> to vector<1x64xf32>
    %291 = vector.extract_strided_slice %276 {offsets = [0, 128], sizes = [1, 64], strides = [1, 1]} : vector<1x192xf32> to vector<1x64xf32>
    %292 = arith.addf %291, %274 : vector<1x64xf32>
    %293 = arith.mulf %288, %292 : vector<1x64xf32>
    %294 = arith.addf %290, %293 : vector<1x64xf32>
    %295 = math.tanh %294 : vector<1x64xf32>
    %cst_102 = arith.constant 1.000000e+00 : f32
    %296 = vector.broadcast %cst_102 : f32 to vector<1x64xf32>
    %297 = arith.subf %296, %289 : vector<1x64xf32>
    %298 = arith.mulf %297, %295 : vector<1x64xf32>
    %299 = arith.mulf %289, %275 : vector<1x64xf32>
    %300 = arith.addf %298, %299 : vector<1x64xf32>
    %301 = vector.extract_strided_slice %300 {offsets = [0, 0], sizes = [1, 32], strides = [1, 1]} : vector<1x64xf32> to vector<1x32xf32>
    %c0_103 = arith.constant 0 : index
    %c0_104 = arith.constant 0 : index
    %302 = vector.load %arg18[%c0_103, %c0_104] : memref<8x64xf32, #tpu.memory_space<vmem>>, vector<1x32xf32>
    tpu.vector_store %arg18[%c0_103, %c0_104], %301 {strides = array<i32>} : memref<8x64xf32, #tpu.memory_space<vmem>>, vector<1x32xf32>,
    %303 = vector.extract_strided_slice %300 {offsets = [0, 32], sizes = [1, 32], strides = [1, 1]} : vector<1x64xf32> to vector<1x32xf32>
    %c7_105 = arith.constant 7 : index
    %c32_106 = arith.constant 32 : index
    %304 = vector.load %arg18[%c7_105, %c32_106] : memref<8x64xf32, #tpu.memory_space<vmem>>, vector<1x32xf32>
    tpu.vector_store %arg18[%c7_105, %c32_106], %303 {strides = array<i32>} : memref<8x64xf32, #tpu.memory_space<vmem>>, vector<1x32xf32>,
    %cst_107 = arith.constant dense<0.000000e+00> : vector<1x192xf32>
    %305 = tpu.matmul %300, %273, %cst_107 {dimension_numbers = #tpu.dot_dimension_numbers<[1], [0], [0], [1], [0, 0, 1, 1], [], []>} : vector<1x64xf32>, vector<64x192xf32>, vector<1x192xf32> -> vector<1x192xf32>
    %306 = vector.extract_strided_slice %272 {offsets = [1, 0], sizes = [1, 192], strides = [1, 1]} : vector<8x192xf32> to vector<1x192xf32>
    %307 = vector.extract_strided_slice %306 {offsets = [0, 0], sizes = [1, 128], strides = [1, 1]} : vector<1x192xf32> to vector<1x128xf32>
    %308 = vector.extract_strided_slice %305 {offsets = [0, 0], sizes = [1, 128], strides = [1, 1]} : vector<1x192xf32> to vector<1x128xf32>
    %309 = arith.addf %307, %308 : vector<1x128xf32>
    %cst_108 = arith.constant 0.000000e+00 : f32
    %310 = vector.broadcast %cst_108 : f32 to vector<1x128xf32>
    %311 = arith.subf %310, %309 : vector<1x128xf32>
    %312 = math.exp %311 : vector<1x128xf32>
    %cst_109 = arith.constant 1.000000e+00 : f32
    %313 = vector.broadcast %cst_109 : f32 to vector<1x128xf32>
    %314 = arith.addf %313, %312 : vector<1x128xf32>
    %cst_110 = arith.constant 1.000000e+00 : f32
    %315 = vector.broadcast %cst_110 : f32 to vector<1x128xf32>
    %316 = arith.divf %315, %314 : vector<1x128xf32>
    %317 = vector.extract_strided_slice %316 {offsets = [0, 0], sizes = [1, 64], strides = [1, 1]} : vector<1x128xf32> to vector<1x64xf32>
    %318 = vector.extract_strided_slice %316 {offsets = [0, 64], sizes = [1, 64], strides = [1, 1]} : vector<1x128xf32> to vector<1x64xf32>
    %319 = vector.extract_strided_slice %306 {offsets = [0, 128], sizes = [1, 64], strides = [1, 1]} : vector<1x192xf32> to vector<1x64xf32>
    %320 = vector.extract_strided_slice %305 {offsets = [0, 128], sizes = [1, 64], strides = [1, 1]} : vector<1x192xf32> to vector<1x64xf32>
    %321 = arith.addf %320, %274 : vector<1x64xf32>
    %322 = arith.mulf %317, %321 : vector<1x64xf32>
    %323 = arith.addf %319, %322 : vector<1x64xf32>
    %324 = math.tanh %323 : vector<1x64xf32>
    %cst_111 = arith.constant 1.000000e+00 : f32
    %325 = vector.broadcast %cst_111 : f32 to vector<1x64xf32>
    %326 = arith.subf %325, %318 : vector<1x64xf32>
    %327 = arith.mulf %326, %324 : vector<1x64xf32>
    %328 = arith.mulf %318, %300 : vector<1x64xf32>
    %329 = arith.addf %327, %328 : vector<1x64xf32>
    %330 = vector.extract_strided_slice %329 {offsets = [0, 0], sizes = [1, 32], strides = [1, 1]} : vector<1x64xf32> to vector<1x32xf32>
    %c1_112 = arith.constant 1 : index
    %c0_113 = arith.constant 0 : index
    %331 = vector.load %arg18[%c1_112, %c0_113] : memref<8x64xf32, #tpu.memory_space<vmem>>, vector<1x32xf32>
    tpu.vector_store %arg18[%c1_112, %c0_113], %330 {strides = array<i32>} : memref<8x64xf32, #tpu.memory_space<vmem>>, vector<1x32xf32>,
    %332 = vector.extract_strided_slice %329 {offsets = [0, 32], sizes = [1, 32], strides = [1, 1]} : vector<1x64xf32> to vector<1x32xf32>
    %c6_114 = arith.constant 6 : index
    %c32_115 = arith.constant 32 : index
    %333 = vector.load %arg18[%c6_114, %c32_115] : memref<8x64xf32, #tpu.memory_space<vmem>>, vector<1x32xf32>
    tpu.vector_store %arg18[%c6_114, %c32_115], %332 {strides = array<i32>} : memref<8x64xf32, #tpu.memory_space<vmem>>, vector<1x32xf32>,
    %cst_116 = arith.constant dense<0.000000e+00> : vector<1x192xf32>
    %334 = tpu.matmul %329, %273, %cst_116 {dimension_numbers = #tpu.dot_dimension_numbers<[1], [0], [0], [1], [0, 0, 1, 1], [], []>} : vector<1x64xf32>, vector<64x192xf32>, vector<1x192xf32> -> vector<1x192xf32>
    %335 = vector.extract_strided_slice %272 {offsets = [2, 0], sizes = [1, 192], strides = [1, 1]} : vector<8x192xf32> to vector<1x192xf32>
    %336 = vector.extract_strided_slice %335 {offsets = [0, 0], sizes = [1, 128], strides = [1, 1]} : vector<1x192xf32> to vector<1x128xf32>
    %337 = vector.extract_strided_slice %334 {offsets = [0, 0], sizes = [1, 128], strides = [1, 1]} : vector<1x192xf32> to vector<1x128xf32>
    %338 = arith.addf %336, %337 : vector<1x128xf32>
    %cst_117 = arith.constant 0.000000e+00 : f32
    %339 = vector.broadcast %cst_117 : f32 to vector<1x128xf32>
    %340 = arith.subf %339, %338 : vector<1x128xf32>
    %341 = math.exp %340 : vector<1x128xf32>
    %cst_118 = arith.constant 1.000000e+00 : f32
    %342 = vector.broadcast %cst_118 : f32 to vector<1x128xf32>
    %343 = arith.addf %342, %341 : vector<1x128xf32>
    %cst_119 = arith.constant 1.000000e+00 : f32
    %344 = vector.broadcast %cst_119 : f32 to vector<1x128xf32>
    %345 = arith.divf %344, %343 : vector<1x128xf32>
    %346 = vector.extract_strided_slice %345 {offsets = [0, 0], sizes = [1, 64], strides = [1, 1]} : vector<1x128xf32> to vector<1x64xf32>
    %347 = vector.extract_strided_slice %345 {offsets = [0, 64], sizes = [1, 64], strides = [1, 1]} : vector<1x128xf32> to vector<1x64xf32>
    %348 = vector.extract_strided_slice %335 {offsets = [0, 128], sizes = [1, 64], strides = [1, 1]} : vector<1x192xf32> to vector<1x64xf32>
    %349 = vector.extract_strided_slice %334 {offsets = [0, 128], sizes = [1, 64], strides = [1, 1]} : vector<1x192xf32> to vector<1x64xf32>
    %350 = arith.addf %349, %274 : vector<1x64xf32>
    %351 = arith.mulf %346, %350 : vector<1x64xf32>
    %352 = arith.addf %348, %351 : vector<1x64xf32>
    %353 = math.tanh %352 : vector<1x64xf32>
    %cst_120 = arith.constant 1.000000e+00 : f32
    %354 = vector.broadcast %cst_120 : f32 to vector<1x64xf32>
    %355 = arith.subf %354, %347 : vector<1x64xf32>
    %356 = arith.mulf %355, %353 : vector<1x64xf32>
    %357 = arith.mulf %347, %329 : vector<1x64xf32>
    %358 = arith.addf %356, %357 : vector<1x64xf32>
    %359 = vector.extract_strided_slice %358 {offsets = [0, 0], sizes = [1, 32], strides = [1, 1]} : vector<1x64xf32> to vector<1x32xf32>
    %c2_121 = arith.constant 2 : index
    %c0_122 = arith.constant 0 : index
    %360 = vector.load %arg18[%c2_121, %c0_122] : memref<8x64xf32, #tpu.memory_space<vmem>>, vector<1x32xf32>
    tpu.vector_store %arg18[%c2_121, %c0_122], %359 {strides = array<i32>} : memref<8x64xf32, #tpu.memory_space<vmem>>, vector<1x32xf32>,
    %361 = vector.extract_strided_slice %358 {offsets = [0, 32], sizes = [1, 32], strides = [1, 1]} : vector<1x64xf32> to vector<1x32xf32>
    %c5_123 = arith.constant 5 : index
    %c32_124 = arith.constant 32 : index
    %362 = vector.load %arg18[%c5_123, %c32_124] : memref<8x64xf32, #tpu.memory_space<vmem>>, vector<1x32xf32>
    tpu.vector_store %arg18[%c5_123, %c32_124], %361 {strides = array<i32>} : memref<8x64xf32, #tpu.memory_space<vmem>>, vector<1x32xf32>,
    %cst_125 = arith.constant dense<0.000000e+00> : vector<1x192xf32>
    %363 = tpu.matmul %358, %273, %cst_125 {dimension_numbers = #tpu.dot_dimension_numbers<[1], [0], [0], [1], [0, 0, 1, 1], [], []>} : vector<1x64xf32>, vector<64x192xf32>, vector<1x192xf32> -> vector<1x192xf32>
    %364 = vector.extract_strided_slice %272 {offsets = [3, 0], sizes = [1, 192], strides = [1, 1]} : vector<8x192xf32> to vector<1x192xf32>
    %365 = vector.extract_strided_slice %364 {offsets = [0, 0], sizes = [1, 128], strides = [1, 1]} : vector<1x192xf32> to vector<1x128xf32>
    %366 = vector.extract_strided_slice %363 {offsets = [0, 0], sizes = [1, 128], strides = [1, 1]} : vector<1x192xf32> to vector<1x128xf32>
    %367 = arith.addf %365, %366 : vector<1x128xf32>
    %cst_126 = arith.constant 0.000000e+00 : f32
    %368 = vector.broadcast %cst_126 : f32 to vector<1x128xf32>
    %369 = arith.subf %368, %367 : vector<1x128xf32>
    %370 = math.exp %369 : vector<1x128xf32>
    %cst_127 = arith.constant 1.000000e+00 : f32
    %371 = vector.broadcast %cst_127 : f32 to vector<1x128xf32>
    %372 = arith.addf %371, %370 : vector<1x128xf32>
    %cst_128 = arith.constant 1.000000e+00 : f32
    %373 = vector.broadcast %cst_128 : f32 to vector<1x128xf32>
    %374 = arith.divf %373, %372 : vector<1x128xf32>
    %375 = vector.extract_strided_slice %374 {offsets = [0, 0], sizes = [1, 64], strides = [1, 1]} : vector<1x128xf32> to vector<1x64xf32>
    %376 = vector.extract_strided_slice %374 {offsets = [0, 64], sizes = [1, 64], strides = [1, 1]} : vector<1x128xf32> to vector<1x64xf32>
    %377 = vector.extract_strided_slice %364 {offsets = [0, 128], sizes = [1, 64], strides = [1, 1]} : vector<1x192xf32> to vector<1x64xf32>
    %378 = vector.extract_strided_slice %363 {offsets = [0, 128], sizes = [1, 64], strides = [1, 1]} : vector<1x192xf32> to vector<1x64xf32>
    %379 = arith.addf %378, %274 : vector<1x64xf32>
    %380 = arith.mulf %375, %379 : vector<1x64xf32>
    %381 = arith.addf %377, %380 : vector<1x64xf32>
    %382 = math.tanh %381 : vector<1x64xf32>
    %cst_129 = arith.constant 1.000000e+00 : f32
    %383 = vector.broadcast %cst_129 : f32 to vector<1x64xf32>
    %384 = arith.subf %383, %376 : vector<1x64xf32>
    %385 = arith.mulf %384, %382 : vector<1x64xf32>
    %386 = arith.mulf %376, %358 : vector<1x64xf32>
    %387 = arith.addf %385, %386 : vector<1x64xf32>
    %388 = vector.extract_strided_slice %387 {offsets = [0, 0], sizes = [1, 32], strides = [1, 1]} : vector<1x64xf32> to vector<1x32xf32>
    %c3_130 = arith.constant 3 : index
    %c0_131 = arith.constant 0 : index
    %389 = vector.load %arg18[%c3_130, %c0_131] : memref<8x64xf32, #tpu.memory_space<vmem>>, vector<1x32xf32>
    tpu.vector_store %arg18[%c3_130, %c0_131], %388 {strides = array<i32>} : memref<8x64xf32, #tpu.memory_space<vmem>>, vector<1x32xf32>,
    %390 = vector.extract_strided_slice %387 {offsets = [0, 32], sizes = [1, 32], strides = [1, 1]} : vector<1x64xf32> to vector<1x32xf32>
    %c4_132 = arith.constant 4 : index
    %c32_133 = arith.constant 32 : index
    %391 = vector.load %arg18[%c4_132, %c32_133] : memref<8x64xf32, #tpu.memory_space<vmem>>, vector<1x32xf32>
    tpu.vector_store %arg18[%c4_132, %c32_133], %390 {strides = array<i32>} : memref<8x64xf32, #tpu.memory_space<vmem>>, vector<1x32xf32>,
    %cst_134 = arith.constant dense<0.000000e+00> : vector<1x192xf32>
    %392 = tpu.matmul %387, %273, %cst_134 {dimension_numbers = #tpu.dot_dimension_numbers<[1], [0], [0], [1], [0, 0, 1, 1], [], []>} : vector<1x64xf32>, vector<64x192xf32>, vector<1x192xf32> -> vector<1x192xf32>
    %393 = vector.extract_strided_slice %272 {offsets = [4, 0], sizes = [1, 192], strides = [1, 1]} : vector<8x192xf32> to vector<1x192xf32>
    %394 = vector.extract_strided_slice %393 {offsets = [0, 0], sizes = [1, 128], strides = [1, 1]} : vector<1x192xf32> to vector<1x128xf32>
    %395 = vector.extract_strided_slice %392 {offsets = [0, 0], sizes = [1, 128], strides = [1, 1]} : vector<1x192xf32> to vector<1x128xf32>
    %396 = arith.addf %394, %395 : vector<1x128xf32>
    %cst_135 = arith.constant 0.000000e+00 : f32
    %397 = vector.broadcast %cst_135 : f32 to vector<1x128xf32>
    %398 = arith.subf %397, %396 : vector<1x128xf32>
    %399 = math.exp %398 : vector<1x128xf32>
    %cst_136 = arith.constant 1.000000e+00 : f32
    %400 = vector.broadcast %cst_136 : f32 to vector<1x128xf32>
    %401 = arith.addf %400, %399 : vector<1x128xf32>
    %cst_137 = arith.constant 1.000000e+00 : f32
    %402 = vector.broadcast %cst_137 : f32 to vector<1x128xf32>
    %403 = arith.divf %402, %401 : vector<1x128xf32>
    %404 = vector.extract_strided_slice %403 {offsets = [0, 0], sizes = [1, 64], strides = [1, 1]} : vector<1x128xf32> to vector<1x64xf32>
    %405 = vector.extract_strided_slice %403 {offsets = [0, 64], sizes = [1, 64], strides = [1, 1]} : vector<1x128xf32> to vector<1x64xf32>
    %406 = vector.extract_strided_slice %393 {offsets = [0, 128], sizes = [1, 64], strides = [1, 1]} : vector<1x192xf32> to vector<1x64xf32>
    %407 = vector.extract_strided_slice %392 {offsets = [0, 128], sizes = [1, 64], strides = [1, 1]} : vector<1x192xf32> to vector<1x64xf32>
    %408 = arith.addf %407, %274 : vector<1x64xf32>
    %409 = arith.mulf %404, %408 : vector<1x64xf32>
    %410 = arith.addf %406, %409 : vector<1x64xf32>
    %411 = math.tanh %410 : vector<1x64xf32>
    %cst_138 = arith.constant 1.000000e+00 : f32
    %412 = vector.broadcast %cst_138 : f32 to vector<1x64xf32>
    %413 = arith.subf %412, %405 : vector<1x64xf32>
    %414 = arith.mulf %413, %411 : vector<1x64xf32>
    %415 = arith.mulf %405, %387 : vector<1x64xf32>
    %416 = arith.addf %414, %415 : vector<1x64xf32>
    %417 = vector.extract_strided_slice %416 {offsets = [0, 0], sizes = [1, 32], strides = [1, 1]} : vector<1x64xf32> to vector<1x32xf32>
    %c4_139 = arith.constant 4 : index
    %c0_140 = arith.constant 0 : index
    %418 = vector.load %arg18[%c4_139, %c0_140] : memref<8x64xf32, #tpu.memory_space<vmem>>, vector<1x32xf32>
    tpu.vector_store %arg18[%c4_139, %c0_140], %417 {strides = array<i32>} : memref<8x64xf32, #tpu.memory_space<vmem>>, vector<1x32xf32>,
    %419 = vector.extract_strided_slice %416 {offsets = [0, 32], sizes = [1, 32], strides = [1, 1]} : vector<1x64xf32> to vector<1x32xf32>
    %c3_141 = arith.constant 3 : index
    %c32_142 = arith.constant 32 : index
    %420 = vector.load %arg18[%c3_141, %c32_142] : memref<8x64xf32, #tpu.memory_space<vmem>>, vector<1x32xf32>
    tpu.vector_store %arg18[%c3_141, %c32_142], %419 {strides = array<i32>} : memref<8x64xf32, #tpu.memory_space<vmem>>, vector<1x32xf32>,
    %cst_143 = arith.constant dense<0.000000e+00> : vector<1x192xf32>
    %421 = tpu.matmul %416, %273, %cst_143 {dimension_numbers = #tpu.dot_dimension_numbers<[1], [0], [0], [1], [0, 0, 1, 1], [], []>} : vector<1x64xf32>, vector<64x192xf32>, vector<1x192xf32> -> vector<1x192xf32>
    %422 = vector.extract_strided_slice %272 {offsets = [5, 0], sizes = [1, 192], strides = [1, 1]} : vector<8x192xf32> to vector<1x192xf32>
    %423 = vector.extract_strided_slice %422 {offsets = [0, 0], sizes = [1, 128], strides = [1, 1]} : vector<1x192xf32> to vector<1x128xf32>
    %424 = vector.extract_strided_slice %421 {offsets = [0, 0], sizes = [1, 128], strides = [1, 1]} : vector<1x192xf32> to vector<1x128xf32>
    %425 = arith.addf %423, %424 : vector<1x128xf32>
    %cst_144 = arith.constant 0.000000e+00 : f32
    %426 = vector.broadcast %cst_144 : f32 to vector<1x128xf32>
    %427 = arith.subf %426, %425 : vector<1x128xf32>
    %428 = math.exp %427 : vector<1x128xf32>
    %cst_145 = arith.constant 1.000000e+00 : f32
    %429 = vector.broadcast %cst_145 : f32 to vector<1x128xf32>
    %430 = arith.addf %429, %428 : vector<1x128xf32>
    %cst_146 = arith.constant 1.000000e+00 : f32
    %431 = vector.broadcast %cst_146 : f32 to vector<1x128xf32>
    %432 = arith.divf %431, %430 : vector<1x128xf32>
    %433 = vector.extract_strided_slice %432 {offsets = [0, 0], sizes = [1, 64], strides = [1, 1]} : vector<1x128xf32> to vector<1x64xf32>
    %434 = vector.extract_strided_slice %432 {offsets = [0, 64], sizes = [1, 64], strides = [1, 1]} : vector<1x128xf32> to vector<1x64xf32>
    %435 = vector.extract_strided_slice %422 {offsets = [0, 128], sizes = [1, 64], strides = [1, 1]} : vector<1x192xf32> to vector<1x64xf32>
    %436 = vector.extract_strided_slice %421 {offsets = [0, 128], sizes = [1, 64], strides = [1, 1]} : vector<1x192xf32> to vector<1x64xf32>
    %437 = arith.addf %436, %274 : vector<1x64xf32>
    %438 = arith.mulf %433, %437 : vector<1x64xf32>
    %439 = arith.addf %435, %438 : vector<1x64xf32>
    %440 = math.tanh %439 : vector<1x64xf32>
    %cst_147 = arith.constant 1.000000e+00 : f32
    %441 = vector.broadcast %cst_147 : f32 to vector<1x64xf32>
    %442 = arith.subf %441, %434 : vector<1x64xf32>
    %443 = arith.mulf %442, %440 : vector<1x64xf32>
    %444 = arith.mulf %434, %416 : vector<1x64xf32>
    %445 = arith.addf %443, %444 : vector<1x64xf32>
    %446 = vector.extract_strided_slice %445 {offsets = [0, 0], sizes = [1, 32], strides = [1, 1]} : vector<1x64xf32> to vector<1x32xf32>
    %c5_148 = arith.constant 5 : index
    %c0_149 = arith.constant 0 : index
    %447 = vector.load %arg18[%c5_148, %c0_149] : memref<8x64xf32, #tpu.memory_space<vmem>>, vector<1x32xf32>
    tpu.vector_store %arg18[%c5_148, %c0_149], %446 {strides = array<i32>} : memref<8x64xf32, #tpu.memory_space<vmem>>, vector<1x32xf32>,
    %448 = vector.extract_strided_slice %445 {offsets = [0, 32], sizes = [1, 32], strides = [1, 1]} : vector<1x64xf32> to vector<1x32xf32>
    %c2_150 = arith.constant 2 : index
    %c32_151 = arith.constant 32 : index
    %449 = vector.load %arg18[%c2_150, %c32_151] : memref<8x64xf32, #tpu.memory_space<vmem>>, vector<1x32xf32>
    tpu.vector_store %arg18[%c2_150, %c32_151], %448 {strides = array<i32>} : memref<8x64xf32, #tpu.memory_space<vmem>>, vector<1x32xf32>,
    %cst_152 = arith.constant dense<0.000000e+00> : vector<1x192xf32>
    %450 = tpu.matmul %445, %273, %cst_152 {dimension_numbers = #tpu.dot_dimension_numbers<[1], [0], [0], [1], [0, 0, 1, 1], [], []>} : vector<1x64xf32>, vector<64x192xf32>, vector<1x192xf32> -> vector<1x192xf32>
    %451 = vector.extract_strided_slice %272 {offsets = [6, 0], sizes = [1, 192], strides = [1, 1]} : vector<8x192xf32> to vector<1x192xf32>
    %452 = vector.extract_strided_slice %451 {offsets = [0, 0], sizes = [1, 128], strides = [1, 1]} : vector<1x192xf32> to vector<1x128xf32>
    %453 = vector.extract_strided_slice %450 {offsets = [0, 0], sizes = [1, 128], strides = [1, 1]} : vector<1x192xf32> to vector<1x128xf32>
    %454 = arith.addf %452, %453 : vector<1x128xf32>
    %cst_153 = arith.constant 0.000000e+00 : f32
    %455 = vector.broadcast %cst_153 : f32 to vector<1x128xf32>
    %456 = arith.subf %455, %454 : vector<1x128xf32>
    %457 = math.exp %456 : vector<1x128xf32>
    %cst_154 = arith.constant 1.000000e+00 : f32
    %458 = vector.broadcast %cst_154 : f32 to vector<1x128xf32>
    %459 = arith.addf %458, %457 : vector<1x128xf32>
    %cst_155 = arith.constant 1.000000e+00 : f32
    %460 = vector.broadcast %cst_155 : f32 to vector<1x128xf32>
    %461 = arith.divf %460, %459 : vector<1x128xf32>
    %462 = vector.extract_strided_slice %461 {offsets = [0, 0], sizes = [1, 64], strides = [1, 1]} : vector<1x128xf32> to vector<1x64xf32>
    %463 = vector.extract_strided_slice %461 {offsets = [0, 64], sizes = [1, 64], strides = [1, 1]} : vector<1x128xf32> to vector<1x64xf32>
    %464 = vector.extract_strided_slice %451 {offsets = [0, 128], sizes = [1, 64], strides = [1, 1]} : vector<1x192xf32> to vector<1x64xf32>
    %465 = vector.extract_strided_slice %450 {offsets = [0, 128], sizes = [1, 64], strides = [1, 1]} : vector<1x192xf32> to vector<1x64xf32>
    %466 = arith.addf %465, %274 : vector<1x64xf32>
    %467 = arith.mulf %462, %466 : vector<1x64xf32>
    %468 = arith.addf %464, %467 : vector<1x64xf32>
    %469 = math.tanh %468 : vector<1x64xf32>
    %cst_156 = arith.constant 1.000000e+00 : f32
    %470 = vector.broadcast %cst_156 : f32 to vector<1x64xf32>
    %471 = arith.subf %470, %463 : vector<1x64xf32>
    %472 = arith.mulf %471, %469 : vector<1x64xf32>
    %473 = arith.mulf %463, %445 : vector<1x64xf32>
    %474 = arith.addf %472, %473 : vector<1x64xf32>
    %475 = vector.extract_strided_slice %474 {offsets = [0, 0], sizes = [1, 32], strides = [1, 1]} : vector<1x64xf32> to vector<1x32xf32>
    %c6_157 = arith.constant 6 : index
    %c0_158 = arith.constant 0 : index
    %476 = vector.load %arg18[%c6_157, %c0_158] : memref<8x64xf32, #tpu.memory_space<vmem>>, vector<1x32xf32>
    tpu.vector_store %arg18[%c6_157, %c0_158], %475 {strides = array<i32>} : memref<8x64xf32, #tpu.memory_space<vmem>>, vector<1x32xf32>,
    %477 = vector.extract_strided_slice %474 {offsets = [0, 32], sizes = [1, 32], strides = [1, 1]} : vector<1x64xf32> to vector<1x32xf32>
    %c1_159 = arith.constant 1 : index
    %c32_160 = arith.constant 32 : index
    %478 = vector.load %arg18[%c1_159, %c32_160] : memref<8x64xf32, #tpu.memory_space<vmem>>, vector<1x32xf32>
    tpu.vector_store %arg18[%c1_159, %c32_160], %477 {strides = array<i32>} : memref<8x64xf32, #tpu.memory_space<vmem>>, vector<1x32xf32>,
    %cst_161 = arith.constant dense<0.000000e+00> : vector<1x192xf32>
    %479 = tpu.matmul %474, %273, %cst_161 {dimension_numbers = #tpu.dot_dimension_numbers<[1], [0], [0], [1], [0, 0, 1, 1], [], []>} : vector<1x64xf32>, vector<64x192xf32>, vector<1x192xf32> -> vector<1x192xf32>
    %480 = vector.extract_strided_slice %272 {offsets = [7, 0], sizes = [1, 192], strides = [1, 1]} : vector<8x192xf32> to vector<1x192xf32>
    %481 = vector.extract_strided_slice %480 {offsets = [0, 0], sizes = [1, 128], strides = [1, 1]} : vector<1x192xf32> to vector<1x128xf32>
    %482 = vector.extract_strided_slice %479 {offsets = [0, 0], sizes = [1, 128], strides = [1, 1]} : vector<1x192xf32> to vector<1x128xf32>
    %483 = arith.addf %481, %482 : vector<1x128xf32>
    %cst_162 = arith.constant 0.000000e+00 : f32
    %484 = vector.broadcast %cst_162 : f32 to vector<1x128xf32>
    %485 = arith.subf %484, %483 : vector<1x128xf32>
    %486 = math.exp %485 : vector<1x128xf32>
    %cst_163 = arith.constant 1.000000e+00 : f32
    %487 = vector.broadcast %cst_163 : f32 to vector<1x128xf32>
    %488 = arith.addf %487, %486 : vector<1x128xf32>
    %cst_164 = arith.constant 1.000000e+00 : f32
    %489 = vector.broadcast %cst_164 : f32 to vector<1x128xf32>
    %490 = arith.divf %489, %488 : vector<1x128xf32>
    %491 = vector.extract_strided_slice %490 {offsets = [0, 0], sizes = [1, 64], strides = [1, 1]} : vector<1x128xf32> to vector<1x64xf32>
    %492 = vector.extract_strided_slice %490 {offsets = [0, 64], sizes = [1, 64], strides = [1, 1]} : vector<1x128xf32> to vector<1x64xf32>
    %493 = vector.extract_strided_slice %480 {offsets = [0, 128], sizes = [1, 64], strides = [1, 1]} : vector<1x192xf32> to vector<1x64xf32>
    %494 = vector.extract_strided_slice %479 {offsets = [0, 128], sizes = [1, 64], strides = [1, 1]} : vector<1x192xf32> to vector<1x64xf32>
    %495 = arith.addf %494, %274 : vector<1x64xf32>
    %496 = arith.mulf %491, %495 : vector<1x64xf32>
    %497 = arith.addf %493, %496 : vector<1x64xf32>
    %498 = math.tanh %497 : vector<1x64xf32>
    %cst_165 = arith.constant 1.000000e+00 : f32
    %499 = vector.broadcast %cst_165 : f32 to vector<1x64xf32>
    %500 = arith.subf %499, %492 : vector<1x64xf32>
    %501 = arith.mulf %500, %498 : vector<1x64xf32>
    %502 = arith.mulf %492, %474 : vector<1x64xf32>
    %503 = arith.addf %501, %502 : vector<1x64xf32>
    %504 = vector.extract_strided_slice %503 {offsets = [0, 0], sizes = [1, 32], strides = [1, 1]} : vector<1x64xf32> to vector<1x32xf32>
    %c7_166 = arith.constant 7 : index
    %c0_167 = arith.constant 0 : index
    %505 = vector.load %arg18[%c7_166, %c0_167] : memref<8x64xf32, #tpu.memory_space<vmem>>, vector<1x32xf32>
    tpu.vector_store %arg18[%c7_166, %c0_167], %504 {strides = array<i32>} : memref<8x64xf32, #tpu.memory_space<vmem>>, vector<1x32xf32>,
    %506 = vector.extract_strided_slice %503 {offsets = [0, 32], sizes = [1, 32], strides = [1, 1]} : vector<1x64xf32> to vector<1x32xf32>
    %c0_168 = arith.constant 0 : index
    %c32_169 = arith.constant 32 : index
    %507 = vector.load %arg18[%c0_168, %c32_169] : memref<8x64xf32, #tpu.memory_space<vmem>>, vector<1x32xf32>
    tpu.vector_store %arg18[%c0_168, %c32_169], %506 {strides = array<i32>} : memref<8x64xf32, #tpu.memory_space<vmem>>, vector<1x32xf32>,
    %c0_170 = arith.constant 0 : index
    %c0_171 = arith.constant 0 : index
    %508 = vector.load %arg18[%c0_170, %c0_171] : memref<8x64xf32, #tpu.memory_space<vmem>>, vector<8x64xf32>
    %cst_172 = arith.constant 0.000000e+00 : f32
    %509 = vector.broadcast %cst_172 : f32 to vector<8x64xf32>
    %510 = arith.maximumf %508, %509 : vector<8x64xf32>
    %c0_173 = arith.constant 0 : index
    %c0_174 = arith.constant 0 : index
    %511 = vector.load %arg13[%c0_173, %c0_174] : memref<64x16xf32, #tpu.memory_space<vmem>>, vector<64x16xf32>
    %cst_175 = arith.constant dense<0.000000e+00> : vector<8x16xf32>
    %512 = tpu.matmul %510, %511, %cst_175 {dimension_numbers = #tpu.dot_dimension_numbers<[1], [0], [0], [1], [0, 0, 1, 1], [], []>} : vector<8x64xf32>, vector<64x16xf32>, vector<8x16xf32> -> vector<8x16xf32>
    %c0_176 = arith.constant 0 : index
    %c0_177 = arith.constant 0 : index
    %513 = vector.load %arg14[%c0_176, %c0_177] : memref<1x16xf32, #tpu.memory_space<vmem>>, vector<1x16xf32>
    %514 = vector.broadcast %513 : vector<1x16xf32> to vector<8x16xf32>
    %515 = arith.addf %512, %514 : vector<8x16xf32>
    %c0_178 = arith.constant 0 : index
    %c0_179 = arith.constant 0 : index
    %516 = vector.load %arg16[%c0_178, %c0_179] : memref<8x16xf32, #tpu.memory_space<vmem>>, vector<8x16xf32>
    tpu.vector_store %arg16[%c0_178, %c0_179], %515 {strides = array<i32>} : memref<8x16xf32, #tpu.memory_space<vmem>>, vector<8x16xf32>,
    return
  }
}

</mosaic_0001>

<llo_original>
// kernel: vtae_forward.1
$region0: #{vtae_forward.1}
  #allocation0 [shape = 'u32[]', space=smem, size = 0x4, offset = 0x4, fixed_abs, tag = 'smem constant byte address 0x4 - core index']
  #allocation1 [shape = 'u32[72,128]{1,0:T(1,128)}', space=vmem, size = 0x9000, scoped, tag = 'internal scratch']
  #allocation2 [shape = 'f32[8,64]{1,0:T(8,128)}', space=vmem, size = 0x1000, scoped, tag = 'scratch operand']
  #allocation3 [shape = 'f32[8,64]{1,0:T(8,128)}', space=vmem, size = 0x1000, scoped, tag = 'scratch operand']
  %s0 = inlined_call_operand.vmem [shape: f32[8,16], index: 0, kind: input, shape index: {}]
  %s1 = inlined_call_operand.vmem [shape: f32[8,16], index: 1, kind: input, shape index: {}]
  %s2 = inlined_call_operand.vmem [shape: f32[8,8], index: 2, kind: input, shape index: {}]
  %s3 = inlined_call_operand.vmem [shape: f32[32,192], index: 3, kind: input, shape index: {}]
  %s4 = inlined_call_operand.vmem [shape: f32[64,192], index: 4, kind: input, shape index: {}]
  %s5 = inlined_call_operand.vmem [shape: f32[1,192], index: 5, kind: input, shape index: {}]
  %s6 = inlined_call_operand.vmem [shape: f32[1,64], index: 6, kind: input, shape index: {}]
  %s7 = inlined_call_operand.vmem [shape: f32[16,192], index: 7, kind: input, shape index: {}]
  %s8 = inlined_call_operand.hbm [shape: f32[64,192], index: 8, kind: input, shape index: {}]
  %s9 = inlined_call_operand.vmem [shape: f32[1,192], index: 9, kind: input, shape index: {}]
  %s10 = inlined_call_operand.vmem [shape: f32[1,64], index: 10, kind: input, shape index: {}]
  %s11 = inlined_call_operand.vmem [shape: f32[64,16], index: 11, kind: input, shape index: {}]
  %s12 = inlined_call_operand.vmem [shape: f32[1,16], index: 12, kind: input, shape index: {}]
  %s13 = inlined_call_operand.vmem [shape: f32[64,16], index: 13, kind: input, shape index: {}]
  %s14 = inlined_call_operand.vmem [shape: f32[1,16], index: 14, kind: input, shape index: {}]
  %s15 = inlined_call_operand.hbm [shape: f32[8,8], index: 15, kind: output, shape index: {0}]
  %s16 = inlined_call_operand.vmem [shape: f32[8,16], index: 16, kind: output, shape index: {1}]
  %17 = xla_tuple %s15, %s16
  %s18 = sld [smem:[#allocation0]]
  $region82: #{vtae_forward.1} parent=0
    _
  %s20 = ssub.s32 1, %s18
  %s21 = scalar_select 0, %s20, %s18
  $region1: #{vtae_forward.1} parent=0
    #allocation4 [shape = 'u8[65536]{0}', space=vmem, size = 0x10000, scoped, tag = 'input window, operand 8, single buffered']
    #allocation5 [shape = 's32[1]{0}', space=sflag, size = 0x4, scoped, tag = 'scoped memory for vtae_forward.1']
    #allocation6 [shape = 's32[1]{0}', space=sflag, size = 0x4, scoped, tag = 'scoped memory for vtae_forward.1']
    #allocation7 [shape = 'u8[4096]{0}', space=vmem, size = 0x1000, scoped, tag = 'output window, operand 0, single buffered']
    %22 = vsyncpa [#allocation5], 0
    %23 = vsyncpa [#allocation6], 0
    // Predicated region
    $region2: #{vtae_forward.1} parent=1 // pred_check
      _
    $region3: #{vtae_forward.1} parent=1 // pred_check_branch
      %25 = sbr.rel (0) target = $region5
    $region4: #{vtae_forward.1} parent=1 // pred_region
      _
    $region5: #{vtae_forward.1} parent=1 // pred_fallthru
      _
    // Predicated region
    $region6: #{vtae_forward.1} parent=1 // pred_check
      _
    $region7: #{vtae_forward.1} parent=1 // pred_check_branch
      %27 = sbr.rel (0) target = $region9
    $region8: #{vtae_forward.1} parent=1 // pred_region
      _
    $region9: #{vtae_forward.1} parent=1 // pred_fallthru
      _
    // Predicated region
    $region10: #{vtae_forward.1} parent=1 // pred_check
      _
    $region11: #{vtae_forward.1} parent=1 // pred_check_branch
      %29 = sbr.rel (0) target = $region13
    $region12: #{vtae_forward.1} parent=1 // pred_region
      _
    $region13: #{vtae_forward.1} parent=1 // pred_fallthru
      _
    // Predicated region
    $region14: #{vtae_forward.1} parent=1 // pred_check
      _
    $region15: #{vtae_forward.1} parent=1 // pred_check_branch
      %31 = sbr.rel (0) target = $region17
    $region16: #{vtae_forward.1} parent=1 // pred_region
      _
    $region17: #{vtae_forward.1} parent=1 // pred_fallthru
      _
    // Predicated region
    $region18: #{vtae_forward.1} parent=1 // pred_check
      _
    $region19: #{vtae_forward.1} parent=1 // pred_check_branch
      %33 = sbr.rel (0) target = $region21
    $region20: #{vtae_forward.1} parent=1 // pred_region
      _
    $region21: #{vtae_forward.1} parent=1 // pred_fallthru
      _
    // Predicated region
    $region22: #{vtae_forward.1} parent=1 // pred_check
      _
    $region23: #{vtae_forward.1} parent=1 // pred_check_branch
      %35 = sbr.rel (0) target = $region25
    $region24: #{vtae_forward.1} parent=1 // pred_region
      _
    $region25: #{vtae_forward.1} parent=1 // pred_fallthru
      _
    // Predicated region
    $region26: #{vtae_forward.1} parent=1 // pred_check
      _
    $region27: #{vtae_forward.1} parent=1 // pred_check_branch
      %37 = sbr.rel (0) target = $region29
    $region28: #{vtae_forward.1} parent=1 // pred_region
      _
    $region29: #{vtae_forward.1} parent=1 // pred_fallthru
      _
    // Predicated region
    $region30: #{vtae_forward.1} parent=1 // pred_check
      _
    $region31: #{vtae_forward.1} parent=1 // pred_check_branch
      %39 = sbr.rel (0) target = $region33
    $region32: #{vtae_forward.1} parent=1 // pred_region
      _
    $region33: #{vtae_forward.1} parent=1 // pred_fallthru
      _
    // Predicated region
    $region34: #{vtae_forward.1} parent=1 // pred_check
      _
    $region35: #{vtae_forward.1} parent=1 // pred_check_branch
      %41 = sbr.rel (0) target = $region37
    $region36: #{vtae_forward.1} parent=1 // pred_region
      %43 = vsyncadd [#allocation5], 0
      %s44 = sshll.u32 %s8, 4
      %s45 = int_to_ptr.hbm [resolvable:$true] %s44
      %s46 = sshll.u32 [#allocation4], 4
      %s47 = int_to_ptr.vmem [resolvable:$true] %s46
      %52 = dma.hbm_to_vmem [thread:$0]  %s45, 2048, %s47, [#allocation5], 256, 256, 16
    $region37: #{vtae_forward.1} parent=1 // pred_fallthru
      _
    // Predicated region
    $region38: #{vtae_forward.1} parent=1 // pred_check
      _
    $region39: #{vtae_forward.1} parent=1 // pred_check_branch
      %54 = sbr.rel (0) target = $region41
    $region40: #{vtae_forward.1} parent=1 // pred_region
      _
    $region41: #{vtae_forward.1} parent=1 // pred_fallthru
      _
    // Predicated region
    $region42: #{vtae_forward.1} parent=1 // pred_check
      _
    $region43: #{vtae_forward.1} parent=1 // pred_check_branch
      %56 = sbr.rel (0) target = $region45
    $region44: #{vtae_forward.1} parent=1 // pred_region
      _
    $region45: #{vtae_forward.1} parent=1 // pred_fallthru
      _
    // Predicated region
    $region46: #{vtae_forward.1} parent=1 // pred_check
      _
    $region47: #{vtae_forward.1} parent=1 // pred_check_branch
      %58 = sbr.rel (0) target = $region49
    $region48: #{vtae_forward.1} parent=1 // pred_region
      _
    $region49: #{vtae_forward.1} parent=1 // pred_fallthru
      _
    // Predicated region
    $region50: #{vtae_forward.1} parent=1 // pred_check
      _
    $region51: #{vtae_forward.1} parent=1 // pred_check_branch
      %60 = sbr.rel (0) target = $region53
    $region52: #{vtae_forward.1} parent=1 // pred_region
      _
    $region53: #{vtae_forward.1} parent=1 // pred_fallthru
      _
    // Predicated region
    $region54: #{vtae_forward.1} parent=1 // pred_check
      _
    $region55: #{vtae_forward.1} parent=1 // pred_check_branch
      %62 = sbr.rel (0) target = $region57
    $region56: #{vtae_forward.1} parent=1 // pred_region
      _
    $region57: #{vtae_forward.1} parent=1 // pred_fallthru
      _
    // Predicated region
    $region58: #{vtae_forward.1} parent=1 // pred_check
      _
    $region59: #{vtae_forward.1} parent=1 // pred_check_branch
      %64 = sbr.rel (0) target = $region61
    $region60: #{vtae_forward.1} parent=1 // pred_region
      _
    $region61: #{vtae_forward.1} parent=1 // pred_fallthru
      _
    // Predicated region
    $region62: #{vtae_forward.1} parent=1 // pred_check
      _
    $region63: #{vtae_forward.1} parent=1 // pred_check_branch
      %66 = sbr.rel (0) target = $region65
    $region64: #{vtae_forward.1} parent=1 // pred_region
      %68 = dma.done [#allocation5], 2048
    $region65: #{vtae_forward.1} parent=1 // pred_fallthru
      _
    %v69 = vld [vmem:[%s0] sm:$0xff]
    %v70 = vld [vmem:[%s1] sm:$0xff]
    %72 = vrot.lane.b32.xlu0 %v70, 16
    %v73 = vpop.permute.xlu0 %72
    %vm75 = vcmask 130048
    %v76 = vsel %vm75, %v69, %v73
    %v77 = vld [vmem:[%s3] sm:$0xff]
    %v78 = vld [vmem:[%s3 + $0x8] sm:$0xff]
    %v79 = vld [vmem:[%s3 + $0x10] sm:$0xff]
    %v80 = vld [vmem:[%s3 + $0x18] sm:$0xff]
    %v81 = vld [vmem:[%s3 + $0x20] sm:$0xff]
    %v82 = vld [vmem:[%s3 + $0x28] sm:$0xff]
    %v83 = vld [vmem:[%s3 + $0x30] sm:$0xff]
    %v84 = vld [vmem:[%s3 + $0x38] sm:$0xff]
    %v85 = vld [vmem:[%s5] sm:$0x3]
    %v87 = vperm.slane %v85, 0
    %v88 = vperm.slane %v85, 1
    %vm91 = vcmask 261120
    %v93 = vsel %vm91, %v76, 0
    %95 = vmatpush.msra.mxu0 0.0
    %96 = vmatpush.msra.mxu0 0.0
    %97 = vmatpush.msra.mxu0 0.0
    %98 = vmatpush.msra.mxu0 0.0
    %99 = vmatpush.msra.mxu0 0.0
    %100 = vmatpush.msra.mxu0 0.0
    %101 = vmatpush.msra.mxu0 0.0
    %102 = vmatpush.msra.mxu0 0.0
    %103 = vmatpush.msra.mxu0 0.0
    %104 = vmatpush.msra.mxu0 0.0
    %105 = vmatpush.msra.mxu0 0.0
    %106 = vmatpush.msra.mxu0 0.0
    %107 = vmatpush.msra.mxu0 %v83
    %108 = vmatpush.msra.mxu0 %v81
    %109 = vmatpush.msra.mxu0 %v79
    %110 = vmatpush.msra.mxu0 %v77
    %111 = vmatmul.f32.gmra.mxu0 %v93
    %v112 = vpop.f32.mrf.mxu0
    %v113 = vadd.f32 %v87, %v112
    %114 = vdwg.mxu0
    %115 = vmatpush.msra.mxu0 0.0
    %116 = vmatpush.msra.mxu0 0.0
    %117 = vmatpush.msra.mxu0 0.0
    %118 = vmatpush.msra.mxu0 0.0
    %119 = vmatpush.msra.mxu0 0.0
    %120 = vmatpush.msra.mxu0 0.0
    %121 = vmatpush.msra.mxu0 0.0
    %122 = vmatpush.msra.mxu0 0.0
    %123 = vmatpush.msra.mxu0 0.0
    %124 = vmatpush.msra.mxu0 0.0
    %125 = vmatpush.msra.mxu0 0.0
    %126 = vmatpush.msra.mxu0 0.0
    %127 = vmatpush.msra.mxu0 %v84
    %128 = vmatpush.msra.mxu0 %v82
    %129 = vmatpush.msra.mxu0 %v80
    %130 = vmatpush.msra.mxu0 %v78
    %131 = vmatmul.f32.gmra.mxu0 %v93
    %v132 = vpop.f32.mrf.mxu0
    %v133 = vadd.f32 %v88, %v132
    %134 = vdwg.mxu0
    %v135 = vld [vmem:[%s4] sm:$0xff]
    %v136 = vld [vmem:[%s4 + $0x8] sm:$0xff]
    %v137 = vld [vmem:[%s4 + $0x10] sm:$0xff]
    %v138 = vld [vmem:[%s4 + $0x18] sm:$0xff]
    %v139 = vld [vmem:[%s4 + $0x20] sm:$0xff]
    %v140 = vld [vmem:[%s4 + $0x28] sm:$0xff]
    %v141 = vld [vmem:[%s4 + $0x30] sm:$0xff]
    %v142 = vld [vmem:[%s4 + $0x38] sm:$0xff]
    %v143 = vld [vmem:[%s4 + $0x40] sm:$0xff]
    %v144 = vld [vmem:[%s4 + $0x48] sm:$0xff]
    %v145 = vld [vmem:[%s4 + $0x50] sm:$0xff]
    %v146 = vld [vmem:[%s4 + $0x58] sm:$0xff]
    %v147 = vld [vmem:[%s4 + $0x60] sm:$0xff]
    %v148 = vld [vmem:[%s4 + $0x68] sm:$0xff]
    %v149 = vld [vmem:[%s4 + $0x70] sm:$0xff]
    %v150 = vld [vmem:[%s4 + $0x78] sm:$0xff]
    %v151 = vld [vmem:[%s6] sm:$0x1]
    %vm152 = vcmask 523264
    %v154 = vsel %vm152, 0.0, 0
    %156 = vmatpush.msra.mxu0 0.0
    %157 = vmatpush.msra.mxu0 0.0
    %158 = vmatpush.msra.mxu0 0.0
    %159 = vmatpush.msra.mxu0 0.0
    %160 = vmatpush.msra.mxu0 0.0
    %161 = vmatpush.msra.mxu0 0.0
    %162 = vmatpush.msra.mxu0 0.0
    %163 = vmatpush.msra.mxu0 0.0
    %164 = vmatpush.msra.mxu0 %v149
    %165 = vmatpush.msra.mxu0 %v147
    %166 = vmatpush.msra.mxu0 %v145
    %167 = vmatpush.msra.mxu0 %v143
    %168 = vmatpush.msra.mxu0 %v141
    %169 = vmatpush.msra.mxu0 %v139
    %170 = vmatpush.msra.mxu0 %v137
    %171 = vmatpush.msra.mxu0 %v135
    %172 = vmatmul.f32.gmra.mxu0 %v154
    %v173 = vpop.f32.mrf.mxu0
    %v174 = vadd.f32 0.0, %v173
    %175 = vdwg.mxu0
    %176 = vmatpush.msra.mxu0 0.0
    %177 = vmatpush.msra.mxu0 0.0
    %178 = vmatpush.msra.mxu0 0.0
    %179 = vmatpush.msra.mxu0 0.0
    %180 = vmatpush.msra.mxu0 0.0
    %181 = vmatpush.msra.mxu0 0.0
    %182 = vmatpush.msra.mxu0 0.0
    %183 = vmatpush.msra.mxu0 0.0
    %184 = vmatpush.msra.mxu0 %v150
    %185 = vmatpush.msra.mxu0 %v148
    %186 = vmatpush.msra.mxu0 %v146
    %187 = vmatpush.msra.mxu0 %v144
    %188 = vmatpush.msra.mxu0 %v142
    %189 = vmatpush.msra.mxu0 %v140
    %190 = vmatpush.msra.mxu0 %v138
    %191 = vmatpush.msra.mxu0 %v136
    %192 = vmatmul.f32.gmra.mxu0 %v154
    %v193 = vpop.f32.mrf.mxu0
    %v194 = vadd.f32 0.0, %v193
    %195 = vdwg.mxu0
    %v196 = vadd.f32 %v113, %v174
    %v197 = vsub.f32 0.0, %v196
    %v198 = vmul.f32 %v197, 1.442695
    %v199 = vpow.pop %v198
    %v200 = vadd.f32 %v199, 1.0
    %v201 = vrcp.pop %v200
    %v202 = vmul.f32 %v200, %v201
    %v203 = vsub.f32 1.0, %v202
    %v204 = vmul.f32 %v201, %v203
    %v205 = vadd.f32 %v201, %v204
    %vm206 = vweird.f32 %v200
    %vm207 = vweird.f32 %v201
    %vm208 = vmor %vm206, %vm207
    %v209 = vsel %vm208, %v201, %v205
    %v210 = vand.u32 2147483647, %v200
    %vm211 = vcmp.eq.f32.partialorder %v210, 8.507059e+37
    %v212 = vand.u32 %v200, 2147483648
    %v213 = vor.u32 1.1754944e-38, %v212
    %v214 = vsel %vm211, %v213, %v209
    %v215 = vmul.f32 1.0, %v214
    %v216 = vadd.f32 %v194, %v151
    %v217 = vmul.f32 %v215, %v216
    %v218 = vadd.f32 %v133, %v217
    %v219 = vtanh.pop %v218
    %v220 = vsub.f32 1.0, %v215
    %222 = vrot.lane.b32.xlu0 %v219, 64
    %v223 = vpop.permute.xlu0 %222
    %v225 = vmul.f32 %v220, %v223
    %v226 = vmul.f32 %v215, 0.0
    %v227 = vadd.f32 %v225, %v226
    %229 = vrot.lane.b32.xlu0 %v227, 64
    %v230 = vpop.permute.xlu0 %229
    %vm232 = vcmask 253952
    %233 = vst.msk [vmem:[#allocation2] sm:$0x1] %vm232, %v230
    %vm234 = vcmask 516352
    %235 = vst.msk [vmem:[#allocation2 + $0x7] sm:$0x1] %vm234, %v230
    %v236 = vsel %vm152, %v230, 0
    %238 = vmatpush.msra.mxu0 0.0
    %239 = vmatpush.msra.mxu0 0.0
    %240 = vmatpush.msra.mxu0 0.0
    %241 = vmatpush.msra.mxu0 0.0
    %242 = vmatpush.msra.mxu0 0.0
    %243 = vmatpush.msra.mxu0 0.0
    %244 = vmatpush.msra.mxu0 0.0
    %245 = vmatpush.msra.mxu0 0.0
    %246 = vmatpush.msra.mxu0 %v149
    %247 = vmatpush.msra.mxu0 %v147
    %248 = vmatpush.msra.mxu0 %v145
    %249 = vmatpush.msra.mxu0 %v143
    %250 = vmatpush.msra.mxu0 %v141
    %251 = vmatpush.msra.mxu0 %v139
    %252 = vmatpush.msra.mxu0 %v137
    %253 = vmatpush.msra.mxu0 %v135
    %254 = vmatmul.f32.gmra.mxu0 %v236
    %v255 = vpop.f32.mrf.mxu0
    %v256 = vadd.f32 0.0, %v255
    %257 = vdwg.mxu0
    %258 = vmatpush.msra.mxu0 0.0
    %259 = vmatpush.msra.mxu0 0.0
    %260 = vmatpush.msra.mxu0 0.0
    %261 = vmatpush.msra.mxu0 0.0
    %262 = vmatpush.msra.mxu0 0.0
    %263 = vmatpush.msra.mxu0 0.0
    %264 = vmatpush.msra.mxu0 0.0
    %265 = vmatpush.msra.mxu0 0.0
    %266 = vmatpush.msra.mxu0 %v150
    %267 = vmatpush.msra.mxu0 %v148
    %268 = vmatpush.msra.mxu0 %v146
    %269 = vmatpush.msra.mxu0 %v144
    %270 = vmatpush.msra.mxu0 %v142
    %271 = vmatpush.msra.mxu0 %v140
    %272 = vmatpush.msra.mxu0 %v138
    %273 = vmatpush.msra.mxu0 %v136
    %274 = vmatmul.f32.gmra.mxu0 %v236
    %v275 = vpop.f32.mrf.mxu0
    %v276 = vadd.f32 0.0, %v275
    %277 = vdwg.mxu0
    %v279 = vrot.slane %v256, 7
    %v281 = vadd.f32 %v113, %v279
    %v282 = vsub.f32 0.0, %v281
    %v283 = vmul.f32 %v282, 1.442695
    %v284 = vpow.pop %v283
    %v285 = vadd.f32 %v284, 1.0
    %v286 = vrcp.pop %v285
    %v287 = vmul.f32 %v285, %v286
    %v288 = vsub.f32 1.0, %v287
    %v289 = vmul.f32 %v286, %v288
    %v290 = vadd.f32 %v286, %v289
    %vm291 = vweird.f32 %v285
    %vm292 = vweird.f32 %v286
    %vm293 = vmor %vm291, %vm292
    %v294 = vsel %vm293, %v286, %v290
    %v295 = vand.u32 2147483647, %v285
    %vm296 = vcmp.eq.f32.partialorder %v295, 8.507059e+37
    %v297 = vand.u32 %v285, 2147483648
    %v298 = vor.u32 1.1754944e-38, %v297
    %v299 = vsel %vm296, %v298, %v294
    %v300 = vmul.f32 1.0, %v299
    %v301 = vadd.f32 %v276, %v151
    %v303 = vrot.slane %v301, 7
    %v305 = vmul.f32 %v300, %v303
    %v306 = vadd.f32 %v133, %v305
    %v307 = vtanh.pop %v306
    %v308 = vsub.f32 1.0, %v300
    %310 = vrot.lane.b32.xlu0 %v307, 64
    %v311 = vpop.permute.xlu0 %310
    %v313 = vmul.f32 %v308, %v311
    %v314 = vrot.slane %v227, 7
    %v316 = vmul.f32 %v300, %v314
    %v317 = vadd.f32 %v313, %v316
    %319 = vrot.lane.b32.xlu0 %v317, 64
    %v320 = vpop.permute.xlu0 %319
    %vm322 = vcmask 254977
    %323 = vst.msk [vmem:[#allocation2] sm:$0x2] %vm322, %v320
    %vm324 = vcmask 517377
    %325 = vst.msk [vmem:[#allocation2 + $0x5] sm:$0x2] %vm324, %v320
    %v326 = vrot.slane %v317, 1
    %327 = vrot.lane.b32.xlu0 %v326, 64
    %v328 = vpop.permute.xlu0 %327
    %v329 = vsel %vm152, %v328, 0
    %331 = vmatpush.msra.mxu0 0.0
    %332 = vmatpush.msra.mxu0 0.0
    %333 = vmatpush.msra.mxu0 0.0
    %334 = vmatpush.msra.mxu0 0.0
    %335 = vmatpush.msra.mxu0 0.0
    %336 = vmatpush.msra.mxu0 0.0
    %337 = vmatpush.msra.mxu0 0.0
    %338 = vmatpush.msra.mxu0 0.0
    %339 = vmatpush.msra.mxu0 %v149
    %340 = vmatpush.msra.mxu0 %v147
    %341 = vmatpush.msra.mxu0 %v145
    %342 = vmatpush.msra.mxu0 %v143
    %343 = vmatpush.msra.mxu0 %v141
    %344 = vmatpush.msra.mxu0 %v139
    %345 = vmatpush.msra.mxu0 %v137
    %346 = vmatpush.msra.mxu0 %v135
    %347 = vmatmul.f32.gmra.mxu0 %v329
    %v348 = vpop.f32.mrf.mxu0
    %v349 = vadd.f32 0.0, %v348
    %350 = vdwg.mxu0
    %351 = vmatpush.msra.mxu0 0.0
    %352 = vmatpush.msra.mxu0 0.0
    %353 = vmatpush.msra.mxu0 0.0
    %354 = vmatpush.msra.mxu0 0.0
    %355 = vmatpush.msra.mxu0 0.0
    %356 = vmatpush.msra.mxu0 0.0
    %357 = vmatpush.msra.mxu0 0.0
    %358 = vmatpush.msra.mxu0 0.0
    %359 = vmatpush.msra.mxu0 %v150
    %360 = vmatpush.msra.mxu0 %v148
    %361 = vmatpush.msra.mxu0 %v146
    %362 = vmatpush.msra.mxu0 %v144
    %363 = vmatpush.msra.mxu0 %v142
    %364 = vmatpush.msra.mxu0 %v140
    %365 = vmatpush.msra.mxu0 %v138
    %366 = vmatpush.msra.mxu0 %v136
    %367 = vmatmul.f32.gmra.mxu0 %v329
    %v368 = vpop.f32.mrf.mxu0
    %v369 = vadd.f32 0.0, %v368
    %370 = vdwg.mxu0
    %v372 = vrot.slane %v349, 6
    %v374 = vadd.f32 %v113, %v372
    %v375 = vsub.f32 0.0, %v374
    %v376 = vmul.f32 %v375, 1.442695
    %v377 = vpow.pop %v376
    %v378 = vadd.f32 %v377, 1.0
    %v379 = vrcp.pop %v378
    %v380 = vmul.f32 %v378, %v379
    %v381 = vsub.f32 1.0, %v380
    %v382 = vmul.f32 %v379, %v381
    %v383 = vadd.f32 %v379, %v382
    %vm384 = vweird.f32 %v378
    %vm385 = vweird.f32 %v379
    %vm386 = vmor %vm384, %vm385
    %v387 = vsel %vm386, %v379, %v383
    %v388 = vand.u32 2147483647, %v378
    %vm389 = vcmp.eq.f32.partialorder %v388, 8.507059e+37
    %v390 = vand.u32 %v378, 2147483648
    %v391 = vor.u32 1.1754944e-38, %v390
    %v392 = vsel %vm389, %v391, %v387
    %v393 = vmul.f32 1.0, %v392
    %v394 = vadd.f32 %v369, %v151
    %v396 = vrot.slane %v394, 6
    %v398 = vmul.f32 %v393, %v396
    %v399 = vadd.f32 %v133, %v398
    %v400 = vtanh.pop %v399
    %v401 = vsub.f32 1.0, %v393
    %403 = vrot.lane.b32.xlu0 %v400, 64
    %v404 = vpop.permute.xlu0 %403
    %v406 = vmul.f32 %v401, %v404
    %v407 = vrot.slane %v317, 7
    %v409 = vmul.f32 %v393, %v407
    %v410 = vadd.f32 %v406, %v409
    %412 = vrot.lane.b32.xlu0 %v410, 64
    %v413 = vpop.permute.xlu0 %412
    %vm415 = vcmask 256002
    %416 = vst.msk [vmem:[#allocation2] sm:$0x4] %vm415, %v413
    %vm417 = vcmask 518402
    %418 = vst.msk [vmem:[#allocation2 + $0x3] sm:$0x4] %vm417, %v413
    %v419 = vrot.slane %v410, 2
    %420 = vrot.lane.b32.xlu0 %v419, 64
    %v421 = vpop.permute.xlu0 %420
    %v422 = vsel %vm152, %v421, 0
    %424 = vmatpush.msra.mxu0 0.0
    %425 = vmatpush.msra.mxu0 0.0
    %426 = vmatpush.msra.mxu0 0.0
    %427 = vmatpush.msra.mxu0 0.0
    %428 = vmatpush.msra.mxu0 0.0
    %429 = vmatpush.msra.mxu0 0.0
    %430 = vmatpush.msra.mxu0 0.0
    %431 = vmatpush.msra.mxu0 0.0
    %432 = vmatpush.msra.mxu0 %v149
    %433 = vmatpush.msra.mxu0 %v147
    %434 = vmatpush.msra.mxu0 %v145
    %435 = vmatpush.msra.mxu0 %v143
    %436 = vmatpush.msra.mxu0 %v141
    %437 = vmatpush.msra.mxu0 %v139
    %438 = vmatpush.msra.mxu0 %v137
    %439 = vmatpush.msra.mxu0 %v135
    %440 = vmatmul.f32.gmra.mxu0 %v422
    %v441 = vpop.f32.mrf.mxu0
    %v442 = vadd.f32 0.0, %v441
    %443 = vdwg.mxu0
    %444 = vmatpush.msra.mxu0 0.0
    %445 = vmatpush.msra.mxu0 0.0
    %446 = vmatpush.msra.mxu0 0.0
    %447 = vmatpush.msra.mxu0 0.0
    %448 = vmatpush.msra.mxu0 0.0
    %449 = vmatpush.msra.mxu0 0.0
    %450 = vmatpush.msra.mxu0 0.0
    %451 = vmatpush.msra.mxu0 0.0
    %452 = vmatpush.msra.mxu0 %v150
    %453 = vmatpush.msra.mxu0 %v148
    %454 = vmatpush.msra.mxu0 %v146
    %455 = vmatpush.msra.mxu0 %v144
    %456 = vmatpush.msra.mxu0 %v142
    %457 = vmatpush.msra.mxu0 %v140
    %458 = vmatpush.msra.mxu0 %v138
    %459 = vmatpush.msra.mxu0 %v136
    %460 = vmatmul.f32.gmra.mxu0 %v422
    %v461 = vpop.f32.mrf.mxu0
    %v462 = vadd.f32 0.0, %v461
    %463 = vdwg.mxu0
    %v465 = vrot.slane %v442, 5
    %v467 = vadd.f32 %v113, %v465
    %v468 = vsub.f32 0.0, %v467
    %v469 = vmul.f32 %v468, 1.442695
    %v470 = vpow.pop %v469
    %v471 = vadd.f32 %v470, 1.0
    %v472 = vrcp.pop %v471
    %v473 = vmul.f32 %v471, %v472
    %v474 = vsub.f32 1.0, %v473
    %v475 = vmul.f32 %v472, %v474
    %v476 = vadd.f32 %v472, %v475
    %vm477 = vweird.f32 %v471
    %vm478 = vweird.f32 %v472
    %vm479 = vmor %vm477, %vm478
    %v480 = vsel %vm479, %v472, %v476
    %v481 = vand.u32 2147483647, %v471
    %vm482 = vcmp.eq.f32.partialorder %v481, 8.507059e+37
    %v483 = vand.u32 %v471, 2147483648
    %v484 = vor.u32 1.1754944e-38, %v483
    %v485 = vsel %vm482, %v484, %v480
    %v486 = vmul.f32 1.0, %v485
    %v487 = vadd.f32 %v462, %v151
    %v489 = vrot.slane %v487, 5
    %v491 = vmul.f32 %v486, %v489
    %v492 = vadd.f32 %v133, %v491
    %v493 = vtanh.pop %v492
    %v494 = vsub.f32 1.0, %v486
    %496 = vrot.lane.b32.xlu0 %v493, 64
    %v497 = vpop.permute.xlu0 %496
    %v499 = vmul.f32 %v494, %v497
    %v500 = vrot.slane %v410, 7
    %v502 = vmul.f32 %v486, %v500
    %v503 = vadd.f32 %v499, %v502
    %505 = vrot.lane.b32.xlu0 %v503, 64
    %v506 = vpop.permute.xlu0 %505
    %vm508 = vcmask 257027
    %509 = vst.msk [vmem:[#allocation2] sm:$0x8] %vm508, %v506
    %vm510 = vcmask 519427
    %511 = vst.msk [vmem:[#allocation2 + $0x1] sm:$0x8] %vm510, %v506
    %v512 = vrot.slane %v503, 3
    %513 = vrot.lane.b32.xlu0 %v512, 64
    %v514 = vpop.permute.xlu0 %513
    %v515 = vsel %vm152, %v514, 0
    %517 = vmatpush.msra.mxu0 0.0
    %518 = vmatpush.msra.mxu0 0.0
    %519 = vmatpush.msra.mxu0 0.0
    %520 = vmatpush.msra.mxu0 0.0
    %521 = vmatpush.msra.mxu0 0.0
    %522 = vmatpush.msra.mxu0 0.0
    %523 = vmatpush.msra.mxu0 0.0
    %524 = vmatpush.msra.mxu0 0.0
    %525 = vmatpush.msra.mxu0 %v149
    %526 = vmatpush.msra.mxu0 %v147
    %527 = vmatpush.msra.mxu0 %v145
    %528 = vmatpush.msra.mxu0 %v143
    %529 = vmatpush.msra.mxu0 %v141
    %530 = vmatpush.msra.mxu0 %v139
    %531 = vmatpush.msra.mxu0 %v137
    %532 = vmatpush.msra.mxu0 %v135
    %533 = vmatmul.f32.gmra.mxu0 %v515
    %v534 = vpop.f32.mrf.mxu0
    %v535 = vadd.f32 0.0, %v534
    %536 = vdwg.mxu0
    %537 = vmatpush.msra.mxu0 0.0
    %538 = vmatpush.msra.mxu0 0.0
    %539 = vmatpush.msra.mxu0 0.0
    %540 = vmatpush.msra.mxu0 0.0
    %541 = vmatpush.msra.mxu0 0.0
    %542 = vmatpush.msra.mxu0 0.0
    %543 = vmatpush.msra.mxu0 0.0
    %544 = vmatpush.msra.mxu0 0.0
    %545 = vmatpush.msra.mxu0 %v150
    %546 = vmatpush.msra.mxu0 %v148
    %547 = vmatpush.msra.mxu0 %v146
    %548 = vmatpush.msra.mxu0 %v144
    %549 = vmatpush.msra.mxu0 %v142
    %550 = vmatpush.msra.mxu0 %v140
    %551 = vmatpush.msra.mxu0 %v138
    %552 = vmatpush.msra.mxu0 %v136
    %553 = vmatmul.f32.gmra.mxu0 %v515
    %v554 = vpop.f32.mrf.mxu0
    %v555 = vadd.f32 0.0, %v554
    %556 = vdwg.mxu0
    %v558 = vrot.slane %v535, 4
    %v560 = vadd.f32 %v113, %v558
    %v561 = vsub.f32 0.0, %v560
    %v562 = vmul.f32 %v561, 1.442695
    %v563 = vpow.pop %v562
    %v564 = vadd.f32 %v563, 1.0
    %v565 = vrcp.pop %v564
    %v566 = vmul.f32 %v564, %v565
    %v567 = vsub.f32 1.0, %v566
    %v568 = vmul.f32 %v565, %v567
    %v569 = vadd.f32 %v565, %v568
    %vm570 = vweird.f32 %v564
    %vm571 = vweird.f32 %v565
    %vm572 = vmor %vm570, %vm571
    %v573 = vsel %vm572, %v565, %v569
    %v574 = vand.u32 2147483647, %v564
    %vm575 = vcmp.eq.f32.partialorder %v574, 8.507059e+37
    %v576 = vand.u32 %v564, 2147483648
    %v577 = vor.u32 1.1754944e-38, %v576
    %v578 = vsel %vm575, %v577, %v573
    %v579 = vmul.f32 1.0, %v578
    %v580 = vadd.f32 %v555, %v151
    %v582 = vrot.slane %v580, 4
    %v584 = vmul.f32 %v579, %v582
    %v585 = vadd.f32 %v133, %v584
    %v586 = vtanh.pop %v585
    %v587 = vsub.f32 1.0, %v579
    %589 = vrot.lane.b32.xlu0 %v586, 64
    %v590 = vpop.permute.xlu0 %589
    %v592 = vmul.f32 %v587, %v590
    %v593 = vrot.slane %v503, 7
    %v595 = vmul.f32 %v579, %v593
    %v596 = vadd.f32 %v592, %v595
    %598 = vrot.lane.b32.xlu0 %v596, 64
    %v599 = vpop.permute.xlu0 %598
    %vm601 = vcmask 258052
    %602 = vst.msk [vmem:[#allocation2] sm:$0x10] %vm601, %v599
    %vm603 = vcmask 520452
    %604 = vst.msk [vmem:[#allocation2 - $0x1] sm:$0x10] %vm603, %v599
    %v605 = vrot.slane %v596, 4
    %606 = vrot.lane.b32.xlu0 %v605, 64
    %v607 = vpop.permute.xlu0 %606
    %v608 = vsel %vm152, %v607, 0
    %610 = vmatpush.msra.mxu0 0.0
    %611 = vmatpush.msra.mxu0 0.0
    %612 = vmatpush.msra.mxu0 0.0
    %613 = vmatpush.msra.mxu0 0.0
    %614 = vmatpush.msra.mxu0 0.0
    %615 = vmatpush.msra.mxu0 0.0
    %616 = vmatpush.msra.mxu0 0.0
    %617 = vmatpush.msra.mxu0 0.0
    %618 = vmatpush.msra.mxu0 %v149
    %619 = vmatpush.msra.mxu0 %v147
    %620 = vmatpush.msra.mxu0 %v145
    %621 = vmatpush.msra.mxu0 %v143
    %622 = vmatpush.msra.mxu0 %v141
    %623 = vmatpush.msra.mxu0 %v139
    %624 = vmatpush.msra.mxu0 %v137
    %625 = vmatpush.msra.mxu0 %v135
    %626 = vmatmul.f32.gmra.mxu0 %v608
    %v627 = vpop.f32.mrf.mxu0
    %v628 = vadd.f32 0.0, %v627
    %629 = vdwg.mxu0
    %630 = vmatpush.msra.mxu0 0.0
    %631 = vmatpush.msra.mxu0 0.0
    %632 = vmatpush.msra.mxu0 0.0
    %633 = vmatpush.msra.mxu0 0.0
    %634 = vmatpush.msra.mxu0 0.0
    %635 = vmatpush.msra.mxu0 0.0
    %636 = vmatpush.msra.mxu0 0.0
    %637 = vmatpush.msra.mxu0 0.0
    %638 = vmatpush.msra.mxu0 %v150
    %639 = vmatpush.msra.mxu0 %v148
    %640 = vmatpush.msra.mxu0 %v146
    %641 = vmatpush.msra.mxu0 %v144
    %642 = vmatpush.msra.mxu0 %v142
    %643 = vmatpush.msra.mxu0 %v140
    %644 = vmatpush.msra.mxu0 %v138
    %645 = vmatpush.msra.mxu0 %v136
    %646 = vmatmul.f32.gmra.mxu0 %v608
    %v647 = vpop.f32.mrf.mxu0
    %v648 = vadd.f32 0.0, %v647
    %649 = vdwg.mxu0
    %v651 = vrot.slane %v628, 3
    %v653 = vadd.f32 %v113, %v651
    %v654 = vsub.f32 0.0, %v653
    %v655 = vmul.f32 %v654, 1.442695
    %v656 = vpow.pop %v655
    %v657 = vadd.f32 %v656, 1.0
    %v658 = vrcp.pop %v657
    %v659 = vmul.f32 %v657, %v658
    %v660 = vsub.f32 1.0, %v659
    %v661 = vmul.f32 %v658, %v660
    %v662 = vadd.f32 %v658, %v661
    %vm663 = vweird.f32 %v657
    %vm664 = vweird.f32 %v658
    %vm665 = vmor %vm663, %vm664
    %v666 = vsel %vm665, %v658, %v662
    %v667 = vand.u32 2147483647, %v657
    %vm668 = vcmp.eq.f32.partialorder %v667, 8.507059e+37
    %v669 = vand.u32 %v657, 2147483648
    %v670 = vor.u32 1.1754944e-38, %v669
    %v671 = vsel %vm668, %v670, %v666
    %v672 = vmul.f32 1.0, %v671
    %v673 = vadd.f32 %v648, %v151
    %v675 = vrot.slane %v673, 3
    %v677 = vmul.f32 %v672, %v675
    %v678 = vadd.f32 %v133, %v677
    %v679 = vtanh.pop %v678
    %v680 = vsub.f32 1.0, %v672
    %682 = vrot.lane.b32.xlu0 %v679, 64
    %v683 = vpop.permute.xlu0 %682
    %v685 = vmul.f32 %v680, %v683
    %v686 = vrot.slane %v596, 7
    %v688 = vmul.f32 %v672, %v686
    %v689 = vadd.f32 %v685, %v688
    %691 = vrot.lane.b32.xlu0 %v689, 64
    %v692 = vpop.permute.xlu0 %691
    %vm694 = vcmask 259077
    %695 = vst.msk [vmem:[#allocation2] sm:$0x20] %vm694, %v692
    %vm696 = vcmask 521477
    %697 = vst.msk [vmem:[#allocation2 - $0x3] sm:$0x20] %vm696, %v692
    %v698 = vrot.slane %v689, 5
    %699 = vrot.lane.b32.xlu0 %v698, 64
    %v700 = vpop.permute.xlu0 %699
    %v701 = vsel %vm152, %v700, 0
    %703 = vmatpush.msra.mxu0 0.0
    %704 = vmatpush.msra.mxu0 0.0
    %705 = vmatpush.msra.mxu0 0.0
    %706 = vmatpush.msra.mxu0 0.0
    %707 = vmatpush.msra.mxu0 0.0
    %708 = vmatpush.msra.mxu0 0.0
    %709 = vmatpush.msra.mxu0 0.0
    %710 = vmatpush.msra.mxu0 0.0
    %711 = vmatpush.msra.mxu0 %v149
    %712 = vmatpush.msra.mxu0 %v147
    %713 = vmatpush.msra.mxu0 %v145
    %714 = vmatpush.msra.mxu0 %v143
    %715 = vmatpush.msra.mxu0 %v141
    %716 = vmatpush.msra.mxu0 %v139
    %717 = vmatpush.msra.mxu0 %v137
    %718 = vmatpush.msra.mxu0 %v135
    %719 = vmatmul.f32.gmra.mxu0 %v701
    %v720 = vpop.f32.mrf.mxu0
    %v721 = vadd.f32 0.0, %v720
    %722 = vdwg.mxu0
    %723 = vmatpush.msra.mxu0 0.0
    %724 = vmatpush.msra.mxu0 0.0
    %725 = vmatpush.msra.mxu0 0.0
    %726 = vmatpush.msra.mxu0 0.0
    %727 = vmatpush.msra.mxu0 0.0
    %728 = vmatpush.msra.mxu0 0.0
    %729 = vmatpush.msra.mxu0 0.0
    %730 = vmatpush.msra.mxu0 0.0
    %731 = vmatpush.msra.mxu0 %v150
    %732 = vmatpush.msra.mxu0 %v148
    %733 = vmatpush.msra.mxu0 %v146
    %734 = vmatpush.msra.mxu0 %v144
    %735 = vmatpush.msra.mxu0 %v142
    %736 = vmatpush.msra.mxu0 %v140
    %737 = vmatpush.msra.mxu0 %v138
    %738 = vmatpush.msra.mxu0 %v136
    %739 = vmatmul.f32.gmra.mxu0 %v701
    %v740 = vpop.f32.mrf.mxu0
    %v741 = vadd.f32 0.0, %v740
    %742 = vdwg.mxu0
    %v744 = vrot.slane %v721, 2
    %v746 = vadd.f32 %v113, %v744
    %v747 = vsub.f32 0.0, %v746
    %v748 = vmul.f32 %v747, 1.442695
    %v749 = vpow.pop %v748
    %v750 = vadd.f32 %v749, 1.0
    %v751 = vrcp.pop %v750
    %v752 = vmul.f32 %v750, %v751
    %v753 = vsub.f32 1.0, %v752
    %v754 = vmul.f32 %v751, %v753
    %v755 = vadd.f32 %v751, %v754
    %vm756 = vweird.f32 %v750
    %vm757 = vweird.f32 %v751
    %vm758 = vmor %vm756, %vm757
    %v759 = vsel %vm758, %v751, %v755
    %v760 = vand.u32 2147483647, %v750
    %vm761 = vcmp.eq.f32.partialorder %v760, 8.507059e+37
    %v762 = vand.u32 %v750, 2147483648
    %v763 = vor.u32 1.1754944e-38, %v762
    %v764 = vsel %vm761, %v763, %v759
    %v765 = vmul.f32 1.0, %v764
    %v766 = vadd.f32 %v741, %v151
    %v768 = vrot.slane %v766, 2
    %v770 = vmul.f32 %v765, %v768
    %v771 = vadd.f32 %v133, %v770
    %v772 = vtanh.pop %v771
    %v773 = vsub.f32 1.0, %v765
    %775 = vrot.lane.b32.xlu0 %v772, 64
    %v776 = vpop.permute.xlu0 %775
    %v778 = vmul.f32 %v773, %v776
    %v779 = vrot.slane %v689, 7
    %v781 = vmul.f32 %v765, %v779
    %v782 = vadd.f32 %v778, %v781
    %784 = vrot.lane.b32.xlu0 %v782, 64
    %v785 = vpop.permute.xlu0 %784
    %vm787 = vcmask 260102
    %788 = vst.msk [vmem:[#allocation2] sm:$0x40] %vm787, %v785
    %vm789 = vcmask 522502
    %790 = vst.msk [vmem:[#allocation2 - $0x5] sm:$0x40] %vm789, %v785
    %v791 = vrot.slane %v782, 6
    %792 = vrot.lane.b32.xlu0 %v791, 64
    %v793 = vpop.permute.xlu0 %792
    %v794 = vsel %vm152, %v793, 0
    %796 = vmatpush.msra.mxu0 0.0
    %797 = vmatpush.msra.mxu0 0.0
    %798 = vmatpush.msra.mxu0 0.0
    %799 = vmatpush.msra.mxu0 0.0
    %800 = vmatpush.msra.mxu0 0.0
    %801 = vmatpush.msra.mxu0 0.0
    %802 = vmatpush.msra.mxu0 0.0
    %803 = vmatpush.msra.mxu0 0.0
    %804 = vmatpush.msra.mxu0 %v149
    %805 = vmatpush.msra.mxu0 %v147
    %806 = vmatpush.msra.mxu0 %v145
    %807 = vmatpush.msra.mxu0 %v143
    %808 = vmatpush.msra.mxu0 %v141
    %809 = vmatpush.msra.mxu0 %v139
    %810 = vmatpush.msra.mxu0 %v137
    %811 = vmatpush.msra.mxu0 %v135
    %812 = vmatmul.f32.gmra.mxu0 %v794
    %v813 = vpop.f32.mrf.mxu0
    %v814 = vadd.f32 0.0, %v813
    %815 = vdwg.mxu0
    %816 = vmatpush.msra.mxu0 0.0
    %817 = vmatpush.msra.mxu0 0.0
    %818 = vmatpush.msra.mxu0 0.0
    %819 = vmatpush.msra.mxu0 0.0
    %820 = vmatpush.msra.mxu0 0.0
    %821 = vmatpush.msra.mxu0 0.0
    %822 = vmatpush.msra.mxu0 0.0
    %823 = vmatpush.msra.mxu0 0.0
    %824 = vmatpush.msra.mxu0 %v150
    %825 = vmatpush.msra.mxu0 %v148
    %826 = vmatpush.msra.mxu0 %v146
    %827 = vmatpush.msra.mxu0 %v144
    %828 = vmatpush.msra.mxu0 %v142
    %829 = vmatpush.msra.mxu0 %v140
    %830 = vmatpush.msra.mxu0 %v138
    %831 = vmatpush.msra.mxu0 %v136
    %832 = vmatmul.f32.gmra.mxu0 %v794
    %v833 = vpop.f32.mrf.mxu0
    %v834 = vadd.f32 0.0, %v833
    %835 = vdwg.mxu0
    %v837 = vrot.slane %v814, 1
    %v839 = vadd.f32 %v113, %v837
    %v840 = vsub.f32 0.0, %v839
    %v841 = vmul.f32 %v840, 1.442695
    %v842 = vpow.pop %v841
    %v843 = vadd.f32 %v842, 1.0
    %v844 = vrcp.pop %v843
    %v845 = vmul.f32 %v843, %v844
    %v846 = vsub.f32 1.0, %v845
    %v847 = vmul.f32 %v844, %v846
    %v848 = vadd.f32 %v844, %v847
    %vm849 = vweird.f32 %v843
    %vm850 = vweird.f32 %v844
    %vm851 = vmor %vm849, %vm850
    %v852 = vsel %vm851, %v844, %v848
    %v853 = vand.u32 2147483647, %v843
    %vm854 = vcmp.eq.f32.partialorder %v853, 8.507059e+37
    %v855 = vand.u32 %v843, 2147483648
    %v856 = vor.u32 1.1754944e-38, %v855
    %v857 = vsel %vm854, %v856, %v852
    %v858 = vmul.f32 1.0, %v857
    %v859 = vadd.f32 %v834, %v151
    %v861 = vrot.slane %v859, 1
    %v863 = vmul.f32 %v858, %v861
    %v864 = vadd.f32 %v133, %v863
    %v865 = vtanh.pop %v864
    %v866 = vsub.f32 1.0, %v858
    %868 = vrot.lane.b32.xlu0 %v865, 64
    %v869 = vpop.permute.xlu0 %868
    %v871 = vmul.f32 %v866, %v869
    %v872 = vrot.slane %v782, 7
    %v874 = vmul.f32 %v858, %v872
    %v875 = vadd.f32 %v871, %v874
    %877 = vrot.lane.b32.xlu0 %v875, 64
    %v878 = vpop.permute.xlu0 %877
    %vm880 = vcmask 261127
    %881 = vst.msk [vmem:[#allocation2] sm:$0x80] %vm880, %v878
    %vm882 = vcmask 523527
    %883 = vst.msk [vmem:[#allocation2 - $0x7] sm:$0x80] %vm882, %v878
    %v884 = vld [vmem:[#allocation2] sm:$0xff]
    %v885 = vmax.f32 %v884, 0.0
    %v886 = vld [vmem:[%s11] sm:$0xff]
    %v887 = vld [vmem:[%s11 + $0x8] sm:$0xff]
    %v888 = vld [vmem:[%s11 + $0x10] sm:$0xff]
    %v889 = vld [vmem:[%s11 + $0x18] sm:$0xff]
    %v890 = vld [vmem:[%s11 + $0x20] sm:$0xff]
    %v891 = vld [vmem:[%s11 + $0x28] sm:$0xff]
    %v892 = vld [vmem:[%s11 + $0x30] sm:$0xff]
    %v893 = vld [vmem:[%s11 + $0x38] sm:$0xff]
    %v894 = vld [vmem:[%s12] sm:$0x1]
    %v896 = vperm.slane %v894, 0
    %v899 = vsel %vm152, %v885, 0
    %901 = vmatpush.msra.mxu0 0.0
    %902 = vmatpush.msra.mxu0 0.0
    %903 = vmatpush.msra.mxu0 0.0
    %904 = vmatpush.msra.mxu0 0.0
    %905 = vmatpush.msra.mxu0 0.0
    %906 = vmatpush.msra.mxu0 0.0
    %907 = vmatpush.msra.mxu0 0.0
    %908 = vmatpush.msra.mxu0 0.0
    %909 = vmatpush.msra.mxu0 %v893
    %910 = vmatpush.msra.mxu0 %v892
    %911 = vmatpush.msra.mxu0 %v891
    %912 = vmatpush.msra.mxu0 %v890
    %913 = vmatpush.msra.mxu0 %v889
    %914 = vmatpush.msra.mxu0 %v888
    %915 = vmatpush.msra.mxu0 %v887
    %916 = vmatpush.msra.mxu0 %v886
    %917 = vmatmul.f32.gmra.mxu0 %v899
    %v918 = vpop.f32.mrf.mxu0
    %v919 = vadd.f32 %v896, %v918
    %920 = vdwg.mxu0
    %v921 = vld [vmem:[%s2] sm:$0xff]
    %v922 = vmul.f32 %v919, 1.442695
    %v923 = vpow.pop %v922
    %925 = vrot.lane.b32.xlu0 %v923, 120
    %v926 = vpop.permute.xlu0 %925
    %v928 = vmul.f32 %v921, %v926
    %v929 = vadd.f32 %v919, %v928
    %vm930 = vcmask 64512
    %931 = vst.msk [vmem:[#allocation7] sm:$0xff] %vm930, %v929
    %v933 = vrot.slane %v929, 7
    %v935 = vrot.slane %v929, 5
    %v937 = vrot.slane %v929, 3
    %v939 = vrot.slane %v929, 1
    %vm941 = vcmask 1040384
    %v942 = vsel %vm941, %v933, %v935
    %vm943 = vcmask 1041408
    %v944 = vsel %vm943, %v942, %v937
    %vm945 = vcmask 1042432
    %v946 = vsel %vm945, %v944, %v939
    %vm947 = vcmask 1043456
    %v948 = vsel %vm947, %v946, %v933
    %vm949 = vcmask 1044480
    %v950 = vsel %vm949, %v948, %v935
    %vm951 = vcmask 1045504
    %v952 = vsel %vm951, %v950, %v937
    %vm953 = vcmask 1046528
    %v954 = vsel %vm953, %v952, %v939
    %956 = vrot.lane.b32.xlu0 %v954, 8
    %v957 = vpop.permute.xlu0 %956
    %v959 = vsel %vm930, %v929, %v957
    %v960 = vld [vmem:[%s7] sm:$0xff]
    %v961 = vld [vmem:[%s7 + $0x8] sm:$0xff]
    %v962 = vld [vmem:[%s7 + $0x10] sm:$0xff]
    %v963 = vld [vmem:[%s7 + $0x18] sm:$0xff]
    %v964 = vld [vmem:[%s9] sm:$0x3]
    %v966 = vperm.slane %v964, 0
    %v967 = vperm.slane %v964, 1
    %v971 = vsel %vm75, %v959, 0
    %973 = vmatpush.msra.mxu0 0.0
    %974 = vmatpush.msra.mxu0 0.0
    %975 = vmatpush.msra.mxu0 0.0
    %976 = vmatpush.msra.mxu0 0.0
    %977 = vmatpush.msra.mxu0 0.0
    %978 = vmatpush.msra.mxu0 0.0
    %979 = vmatpush.msra.mxu0 0.0
    %980 = vmatpush.msra.mxu0 0.0
    %981 = vmatpush.msra.mxu0 0.0
    %982 = vmatpush.msra.mxu0 0.0
    %983 = vmatpush.msra.mxu0 0.0
    %984 = vmatpush.msra.mxu0 0.0
    %985 = vmatpush.msra.mxu0 0.0
    %986 = vmatpush.msra.mxu0 0.0
    %987 = vmatpush.msra.mxu0 %v962
    %988 = vmatpush.msra.mxu0 %v960
    %989 = vmatmul.f32.gmra.mxu0 %v971
    %v990 = vpop.f32.mrf.mxu0
    %v991 = vadd.f32 %v966, %v990
    %992 = vdwg.mxu0
    %993 = vmatpush.msra.mxu0 0.0
    %994 = vmatpush.msra.mxu0 0.0
    %995 = vmatpush.msra.mxu0 0.0
    %996 = vmatpush.msra.mxu0 0.0
    %997 = vmatpush.msra.mxu0 0.0
    %998 = vmatpush.msra.mxu0 0.0
    %999 = vmatpush.msra.mxu0 0.0
    %1000 = vmatpush.msra.mxu0 0.0
    %1001 = vmatpush.msra.mxu0 0.0
    %1002 = vmatpush.msra.mxu0 0.0
    %1003 = vmatpush.msra.mxu0 0.0
    %1004 = vmatpush.msra.mxu0 0.0
    %1005 = vmatpush.msra.mxu0 0.0
    %1006 = vmatpush.msra.mxu0 0.0
    %1007 = vmatpush.msra.mxu0 %v963
    %1008 = vmatpush.msra.mxu0 %v961
    %1009 = vmatmul.f32.gmra.mxu0 %v971
    %v1010 = vpop.f32.mrf.mxu0
    %v1011 = vadd.f32 %v967, %v1010
    %1012 = vdwg.mxu0
    %v1013 = vld [vmem:[#allocation4] sm:$0xff]
    %v1014 = vld [vmem:[#allocation4 + $0x8] sm:$0xff]
    %v1015 = vld [vmem:[#allocation4 + $0x10] sm:$0xff]
    %v1016 = vld [vmem:[#allocation4 + $0x18] sm:$0xff]
    %v1017 = vld [vmem:[#allocation4 + $0x20] sm:$0xff]
    %v1018 = vld [vmem:[#allocation4 + $0x28] sm:$0xff]
    %v1019 = vld [vmem:[#allocation4 + $0x30] sm:$0xff]
    %v1020 = vld [vmem:[#allocation4 + $0x38] sm:$0xff]
    %v1021 = vld [vmem:[#allocation4 + $0x40] sm:$0xff]
    %v1022 = vld [vmem:[#allocation4 + $0x48] sm:$0xff]
    %v1023 = vld [vmem:[#allocation4 + $0x50] sm:$0xff]
    %v1024 = vld [vmem:[#allocation4 + $0x58] sm:$0xff]
    %v1025 = vld [vmem:[#allocation4 + $0x60] sm:$0xff]
    %v1026 = vld [vmem:[#allocation4 + $0x68] sm:$0xff]
    %v1027 = vld [vmem:[#allocation4 + $0x70] sm:$0xff]
    %v1028 = vld [vmem:[#allocation4 + $0x78] sm:$0xff]
    %v1029 = vld [vmem:[%s10] sm:$0x1]
    %1030 = vmatpush.msra.mxu0 0.0
    %1031 = vmatpush.msra.mxu0 0.0
    %1032 = vmatpush.msra.mxu0 0.0
    %1033 = vmatpush.msra.mxu0 0.0
    %1034 = vmatpush.msra.mxu0 0.0
    %1035 = vmatpush.msra.mxu0 0.0
    %1036 = vmatpush.msra.mxu0 0.0
    %1037 = vmatpush.msra.mxu0 0.0
    %1038 = vmatpush.msra.mxu0 %v1027
    %1039 = vmatpush.msra.mxu0 %v1025
    %1040 = vmatpush.msra.mxu0 %v1023
    %1041 = vmatpush.msra.mxu0 %v1021
    %1042 = vmatpush.msra.mxu0 %v1019
    %1043 = vmatpush.msra.mxu0 %v1017
    %1044 = vmatpush.msra.mxu0 %v1015
    %1045 = vmatpush.msra.mxu0 %v1013
    %1046 = vmatmul.f32.gmra.mxu0 %v154
    %v1047 = vpop.f32.mrf.mxu0
    %v1048 = vadd.f32 0.0, %v1047
    %1049 = vdwg.mxu0
    %1050 = vmatpush.msra.mxu0 0.0
    %1051 = vmatpush.msra.mxu0 0.0
    %1052 = vmatpush.msra.mxu0 0.0
    %1053 = vmatpush.msra.mxu0 0.0
    %1054 = vmatpush.msra.mxu0 0.0
    %1055 = vmatpush.msra.mxu0 0.0
    %1056 = vmatpush.msra.mxu0 0.0
    %1057 = vmatpush.msra.mxu0 0.0
    %1058 = vmatpush.msra.mxu0 %v1028
    %1059 = vmatpush.msra.mxu0 %v1026
    %1060 = vmatpush.msra.mxu0 %v1024
    %1061 = vmatpush.msra.mxu0 %v1022
    %1062 = vmatpush.msra.mxu0 %v1020
    %1063 = vmatpush.msra.mxu0 %v1018
    %1064 = vmatpush.msra.mxu0 %v1016
    %1065 = vmatpush.msra.mxu0 %v1014
    %1066 = vmatmul.f32.gmra.mxu0 %v154
    %v1067 = vpop.f32.mrf.mxu0
    %v1068 = vadd.f32 0.0, %v1067
    %1069 = vdwg.mxu0
    %v1070 = vadd.f32 %v991, %v1048
    %v1071 = vsub.f32 0.0, %v1070
    %v1072 = vmul.f32 %v1071, 1.442695
    %v1073 = vpow.pop %v1072
    %v1074 = vadd.f32 %v1073, 1.0
    %v1075 = vrcp.pop %v1074
    %v1076 = vmul.f32 %v1074, %v1075
    %v1077 = vsub.f32 1.0, %v1076
    %v1078 = vmul.f32 %v1075, %v1077
    %v1079 = vadd.f32 %v1075, %v1078
    %vm1080 = vweird.f32 %v1074
    %vm1081 = vweird.f32 %v1075
    %vm1082 = vmor %vm1080, %vm1081
    %v1083 = vsel %vm1082, %v1075, %v1079
    %v1084 = vand.u32 2147483647, %v1074
    %vm1085 = vcmp.eq.f32.partialorder %v1084, 8.507059e+37
    %v1086 = vand.u32 %v1074, 2147483648
    %v1087 = vor.u32 1.1754944e-38, %v1086
    %v1088 = vsel %vm1085, %v1087, %v1083
    %v1089 = vmul.f32 1.0, %v1088
    %v1090 = vadd.f32 %v1068, %v1029
    %v1091 = vmul.f32 %v1089, %v1090
    %v1092 = vadd.f32 %v1011, %v1091
    %v1093 = vtanh.pop %v1092
    %v1094 = vsub.f32 1.0, %v1089
    %1096 = vrot.lane.b32.xlu0 %v1093, 64
    %v1097 = vpop.permute.xlu0 %1096
    %v1099 = vmul.f32 %v1094, %v1097
    %v1100 = vmul.f32 %v1089, 0.0
    %v1101 = vadd.f32 %v1099, %v1100
    %1103 = vrot.lane.b32.xlu0 %v1101, 64
    %v1104 = vpop.permute.xlu0 %1103
    %1106 = vst.msk [vmem:[#allocation3] sm:$0x1] %vm232, %v1104
    %1107 = vst.msk [vmem:[#allocation3 + $0x7] sm:$0x1] %vm234, %v1104
    %v1108 = vsel %vm152, %v1104, 0
    %1110 = vmatpush.msra.mxu0 0.0
    %1111 = vmatpush.msra.mxu0 0.0
    %1112 = vmatpush.msra.mxu0 0.0
    %1113 = vmatpush.msra.mxu0 0.0
    %1114 = vmatpush.msra.mxu0 0.0
    %1115 = vmatpush.msra.mxu0 0.0
    %1116 = vmatpush.msra.mxu0 0.0
    %1117 = vmatpush.msra.mxu0 0.0
    %1118 = vmatpush.msra.mxu0 %v1027
    %1119 = vmatpush.msra.mxu0 %v1025
    %1120 = vmatpush.msra.mxu0 %v1023
    %1121 = vmatpush.msra.mxu0 %v1021
    %1122 = vmatpush.msra.mxu0 %v1019
    %1123 = vmatpush.msra.mxu0 %v1017
    %1124 = vmatpush.msra.mxu0 %v1015
    %1125 = vmatpush.msra.mxu0 %v1013
    %1126 = vmatmul.f32.gmra.mxu0 %v1108
    %v1127 = vpop.f32.mrf.mxu0
    %v1128 = vadd.f32 0.0, %v1127
    %1129 = vdwg.mxu0
    %1130 = vmatpush.msra.mxu0 0.0
    %1131 = vmatpush.msra.mxu0 0.0
    %1132 = vmatpush.msra.mxu0 0.0
    %1133 = vmatpush.msra.mxu0 0.0
    %1134 = vmatpush.msra.mxu0 0.0
    %1135 = vmatpush.msra.mxu0 0.0
    %1136 = vmatpush.msra.mxu0 0.0
    %1137 = vmatpush.msra.mxu0 0.0
    %1138 = vmatpush.msra.mxu0 %v1028
    %1139 = vmatpush.msra.mxu0 %v1026
    %1140 = vmatpush.msra.mxu0 %v1024
    %1141 = vmatpush.msra.mxu0 %v1022
    %1142 = vmatpush.msra.mxu0 %v1020
    %1143 = vmatpush.msra.mxu0 %v1018
    %1144 = vmatpush.msra.mxu0 %v1016
    %1145 = vmatpush.msra.mxu0 %v1014
    %1146 = vmatmul.f32.gmra.mxu0 %v1108
    %v1147 = vpop.f32.mrf.mxu0
    %v1148 = vadd.f32 0.0, %v1147
    %1149 = vdwg.mxu0
    %v1151 = vrot.slane %v1128, 7
    %v1153 = vadd.f32 %v991, %v1151
    %v1154 = vsub.f32 0.0, %v1153
    %v1155 = vmul.f32 %v1154, 1.442695
    %v1156 = vpow.pop %v1155
    %v1157 = vadd.f32 %v1156, 1.0
    %v1158 = vrcp.pop %v1157
    %v1159 = vmul.f32 %v1157, %v1158
    %v1160 = vsub.f32 1.0, %v1159
    %v1161 = vmul.f32 %v1158, %v1160
    %v1162 = vadd.f32 %v1158, %v1161
    %vm1163 = vweird.f32 %v1157
    %vm1164 = vweird.f32 %v1158
    %vm1165 = vmor %vm1163, %vm1164
    %v1166 = vsel %vm1165, %v1158, %v1162
    %v1167 = vand.u32 2147483647, %v1157
    %vm1168 = vcmp.eq.f32.partialorder %v1167, 8.507059e+37
    %v1169 = vand.u32 %v1157, 2147483648
    %v1170 = vor.u32 1.1754944e-38, %v1169
    %v1171 = vsel %vm1168, %v1170, %v1166
    %v1172 = vmul.f32 1.0, %v1171
    %v1173 = vadd.f32 %v1148, %v1029
    %v1175 = vrot.slane %v1173, 7
    %v1177 = vmul.f32 %v1172, %v1175
    %v1178 = vadd.f32 %v1011, %v1177
    %v1179 = vtanh.pop %v1178
    %v1180 = vsub.f32 1.0, %v1172
    %1182 = vrot.lane.b32.xlu0 %v1179, 64
    %v1183 = vpop.permute.xlu0 %1182
    %v1185 = vmul.f32 %v1180, %v1183
    %v1186 = vrot.slane %v1101, 7
    %v1188 = vmul.f32 %v1172, %v1186
    %v1189 = vadd.f32 %v1185, %v1188
    %1191 = vrot.lane.b32.xlu0 %v1189, 64
    %v1192 = vpop.permute.xlu0 %1191
    %1194 = vst.msk [vmem:[#allocation3] sm:$0x2] %vm322, %v1192
    %1195 = vst.msk [vmem:[#allocation3 + $0x5] sm:$0x2] %vm324, %v1192
    %v1196 = vrot.slane %v1189, 1
    %1197 = vrot.lane.b32.xlu0 %v1196, 64
    %v1198 = vpop.permute.xlu0 %1197
    %v1199 = vsel %vm152, %v1198, 0
    %1201 = vmatpush.msra.mxu0 0.0
    %1202 = vmatpush.msra.mxu0 0.0
    %1203 = vmatpush.msra.mxu0 0.0
    %1204 = vmatpush.msra.mxu0 0.0
    %1205 = vmatpush.msra.mxu0 0.0
    %1206 = vmatpush.msra.mxu0 0.0
    %1207 = vmatpush.msra.mxu0 0.0
    %1208 = vmatpush.msra.mxu0 0.0
    %1209 = vmatpush.msra.mxu0 %v1027
    %1210 = vmatpush.msra.mxu0 %v1025
    %1211 = vmatpush.msra.mxu0 %v1023
    %1212 = vmatpush.msra.mxu0 %v1021
    %1213 = vmatpush.msra.mxu0 %v1019
    %1214 = vmatpush.msra.mxu0 %v1017
    %1215 = vmatpush.msra.mxu0 %v1015
    %1216 = vmatpush.msra.mxu0 %v1013
    %1217 = vmatmul.f32.gmra.mxu0 %v1199
    %v1218 = vpop.f32.mrf.mxu0
    %v1219 = vadd.f32 0.0, %v1218
    %1220 = vdwg.mxu0
    %1221 = vmatpush.msra.mxu0 0.0
    %1222 = vmatpush.msra.mxu0 0.0
    %1223 = vmatpush.msra.mxu0 0.0
    %1224 = vmatpush.msra.mxu0 0.0
    %1225 = vmatpush.msra.mxu0 0.0
    %1226 = vmatpush.msra.mxu0 0.0
    %1227 = vmatpush.msra.mxu0 0.0
    %1228 = vmatpush.msra.mxu0 0.0
    %1229 = vmatpush.msra.mxu0 %v1028
    %1230 = vmatpush.msra.mxu0 %v1026
    %1231 = vmatpush.msra.mxu0 %v1024
    %1232 = vmatpush.msra.mxu0 %v1022
    %1233 = vmatpush.msra.mxu0 %v1020
    %1234 = vmatpush.msra.mxu0 %v1018
    %1235 = vmatpush.msra.mxu0 %v1016
    %1236 = vmatpush.msra.mxu0 %v1014
    %1237 = vmatmul.f32.gmra.mxu0 %v1199
    %v1238 = vpop.f32.mrf.mxu0
    %v1239 = vadd.f32 0.0, %v1238
    %1240 = vdwg.mxu0
    %v1242 = vrot.slane %v1219, 6
    %v1244 = vadd.f32 %v991, %v1242
    %v1245 = vsub.f32 0.0, %v1244
    %v1246 = vmul.f32 %v1245, 1.442695
    %v1247 = vpow.pop %v1246
    %v1248 = vadd.f32 %v1247, 1.0
    %v1249 = vrcp.pop %v1248
    %v1250 = vmul.f32 %v1248, %v1249
    %v1251 = vsub.f32 1.0, %v1250
    %v1252 = vmul.f32 %v1249, %v1251
    %v1253 = vadd.f32 %v1249, %v1252
    %vm1254 = vweird.f32 %v1248
    %vm1255 = vweird.f32 %v1249
    %vm1256 = vmor %vm1254, %vm1255
    %v1257 = vsel %vm1256, %v1249, %v1253
    %v1258 = vand.u32 2147483647, %v1248
    %vm1259 = vcmp.eq.f32.partialorder %v1258, 8.507059e+37
    %v1260 = vand.u32 %v1248, 2147483648
    %v1261 = vor.u32 1.1754944e-38, %v1260
    %v1262 = vsel %vm1259, %v1261, %v1257
    %v1263 = vmul.f32 1.0, %v1262
    %v1264 = vadd.f32 %v1239, %v1029
    %v1266 = vrot.slane %v1264, 6
    %v1268 = vmul.f32 %v1263, %v1266
    %v1269 = vadd.f32 %v1011, %v1268
    %v1270 = vtanh.pop %v1269
    %v1271 = vsub.f32 1.0, %v1263
    %1273 = vrot.lane.b32.xlu0 %v1270, 64
    %v1274 = vpop.permute.xlu0 %1273
    %v1276 = vmul.f32 %v1271, %v1274
    %v1277 = vrot.slane %v1189, 7
    %v1279 = vmul.f32 %v1263, %v1277
    %v1280 = vadd.f32 %v1276, %v1279
    %1282 = vrot.lane.b32.xlu0 %v1280, 64
    %v1283 = vpop.permute.xlu0 %1282
    %1285 = vst.msk [vmem:[#allocation3] sm:$0x4] %vm415, %v1283
    %1286 = vst.msk [vmem:[#allocation3 + $0x3] sm:$0x4] %vm417, %v1283
    %v1287 = vrot.slane %v1280, 2
    %1288 = vrot.lane.b32.xlu0 %v1287, 64
    %v1289 = vpop.permute.xlu0 %1288
    %v1290 = vsel %vm152, %v1289, 0
    %1292 = vmatpush.msra.mxu0 0.0
    %1293 = vmatpush.msra.mxu0 0.0
    %1294 = vmatpush.msra.mxu0 0.0
    %1295 = vmatpush.msra.mxu0 0.0
    %1296 = vmatpush.msra.mxu0 0.0
    %1297 = vmatpush.msra.mxu0 0.0
    %1298 = vmatpush.msra.mxu0 0.0
    %1299 = vmatpush.msra.mxu0 0.0
    %1300 = vmatpush.msra.mxu0 %v1027
    %1301 = vmatpush.msra.mxu0 %v1025
    %1302 = vmatpush.msra.mxu0 %v1023
    %1303 = vmatpush.msra.mxu0 %v1021
    %1304 = vmatpush.msra.mxu0 %v1019
    %1305 = vmatpush.msra.mxu0 %v1017
    %1306 = vmatpush.msra.mxu0 %v1015
    %1307 = vmatpush.msra.mxu0 %v1013
    %1308 = vmatmul.f32.gmra.mxu0 %v1290
    %v1309 = vpop.f32.mrf.mxu0
    %v1310 = vadd.f32 0.0, %v1309
    %1311 = vdwg.mxu0
    %1312 = vmatpush.msra.mxu0 0.0
    %1313 = vmatpush.msra.mxu0 0.0
    %1314 = vmatpush.msra.mxu0 0.0
    %1315 = vmatpush.msra.mxu0 0.0
    %1316 = vmatpush.msra.mxu0 0.0
    %1317 = vmatpush.msra.mxu0 0.0
    %1318 = vmatpush.msra.mxu0 0.0
    %1319 = vmatpush.msra.mxu0 0.0
    %1320 = vmatpush.msra.mxu0 %v1028
    %1321 = vmatpush.msra.mxu0 %v1026
    %1322 = vmatpush.msra.mxu0 %v1024
    %1323 = vmatpush.msra.mxu0 %v1022
    %1324 = vmatpush.msra.mxu0 %v1020
    %1325 = vmatpush.msra.mxu0 %v1018
    %1326 = vmatpush.msra.mxu0 %v1016
    %1327 = vmatpush.msra.mxu0 %v1014
    %1328 = vmatmul.f32.gmra.mxu0 %v1290
    %v1329 = vpop.f32.mrf.mxu0
    %v1330 = vadd.f32 0.0, %v1329
    %1331 = vdwg.mxu0
    %v1333 = vrot.slane %v1310, 5
    %v1335 = vadd.f32 %v991, %v1333
    %v1336 = vsub.f32 0.0, %v1335
    %v1337 = vmul.f32 %v1336, 1.442695
    %v1338 = vpow.pop %v1337
    %v1339 = vadd.f32 %v1338, 1.0
    %v1340 = vrcp.pop %v1339
    %v1341 = vmul.f32 %v1339, %v1340
    %v1342 = vsub.f32 1.0, %v1341
    %v1343 = vmul.f32 %v1340, %v1342
    %v1344 = vadd.f32 %v1340, %v1343
    %vm1345 = vweird.f32 %v1339
    %vm1346 = vweird.f32 %v1340
    %vm1347 = vmor %vm1345, %vm1346
    %v1348 = vsel %vm1347, %v1340, %v1344
    %v1349 = vand.u32 2147483647, %v1339
    %vm1350 = vcmp.eq.f32.partialorder %v1349, 8.507059e+37
    %v1351 = vand.u32 %v1339, 2147483648
    %v1352 = vor.u32 1.1754944e-38, %v1351
    %v1353 = vsel %vm1350, %v1352, %v1348
    %v1354 = vmul.f32 1.0, %v1353
    %v1355 = vadd.f32 %v1330, %v1029
    %v1357 = vrot.slane %v1355, 5
    %v1359 = vmul.f32 %v1354, %v1357
    %v1360 = vadd.f32 %v1011, %v1359
    %v1361 = vtanh.pop %v1360
    %v1362 = vsub.f32 1.0, %v1354
    %1364 = vrot.lane.b32.xlu0 %v1361, 64
    %v1365 = vpop.permute.xlu0 %1364
    %v1367 = vmul.f32 %v1362, %v1365
    %v1368 = vrot.slane %v1280, 7
    %v1370 = vmul.f32 %v1354, %v1368
    %v1371 = vadd.f32 %v1367, %v1370
    %1373 = vrot.lane.b32.xlu0 %v1371, 64
    %v1374 = vpop.permute.xlu0 %1373
    %1376 = vst.msk [vmem:[#allocation3] sm:$0x8] %vm508, %v1374
    %1377 = vst.msk [vmem:[#allocation3 + $0x1] sm:$0x8] %vm510, %v1374
    %v1378 = vrot.slane %v1371, 3
    %1379 = vrot.lane.b32.xlu0 %v1378, 64
    %v1380 = vpop.permute.xlu0 %1379
    %v1381 = vsel %vm152, %v1380, 0
    %1383 = vmatpush.msra.mxu0 0.0
    %1384 = vmatpush.msra.mxu0 0.0
    %1385 = vmatpush.msra.mxu0 0.0
    %1386 = vmatpush.msra.mxu0 0.0
    %1387 = vmatpush.msra.mxu0 0.0
    %1388 = vmatpush.msra.mxu0 0.0
    %1389 = vmatpush.msra.mxu0 0.0
    %1390 = vmatpush.msra.mxu0 0.0
    %1391 = vmatpush.msra.mxu0 %v1027
    %1392 = vmatpush.msra.mxu0 %v1025
    %1393 = vmatpush.msra.mxu0 %v1023
    %1394 = vmatpush.msra.mxu0 %v1021
    %1395 = vmatpush.msra.mxu0 %v1019
    %1396 = vmatpush.msra.mxu0 %v1017
    %1397 = vmatpush.msra.mxu0 %v1015
    %1398 = vmatpush.msra.mxu0 %v1013
    %1399 = vmatmul.f32.gmra.mxu0 %v1381
    %v1400 = vpop.f32.mrf.mxu0
    %v1401 = vadd.f32 0.0, %v1400
    %1402 = vdwg.mxu0
    %1403 = vmatpush.msra.mxu0 0.0
    %1404 = vmatpush.msra.mxu0 0.0
    %1405 = vmatpush.msra.mxu0 0.0
    %1406 = vmatpush.msra.mxu0 0.0
    %1407 = vmatpush.msra.mxu0 0.0
    %1408 = vmatpush.msra.mxu0 0.0
    %1409 = vmatpush.msra.mxu0 0.0
    %1410 = vmatpush.msra.mxu0 0.0
    %1411 = vmatpush.msra.mxu0 %v1028
    %1412 = vmatpush.msra.mxu0 %v1026
    %1413 = vmatpush.msra.mxu0 %v1024
    %1414 = vmatpush.msra.mxu0 %v1022
    %1415 = vmatpush.msra.mxu0 %v1020
    %1416 = vmatpush.msra.mxu0 %v1018
    %1417 = vmatpush.msra.mxu0 %v1016
    %1418 = vmatpush.msra.mxu0 %v1014
    %1419 = vmatmul.f32.gmra.mxu0 %v1381
    %v1420 = vpop.f32.mrf.mxu0
    %v1421 = vadd.f32 0.0, %v1420
    %1422 = vdwg.mxu0
    %v1424 = vrot.slane %v1401, 4
    %v1426 = vadd.f32 %v991, %v1424
    %v1427 = vsub.f32 0.0, %v1426
    %v1428 = vmul.f32 %v1427, 1.442695
    %v1429 = vpow.pop %v1428
    %v1430 = vadd.f32 %v1429, 1.0
    %v1431 = vrcp.pop %v1430
    %v1432 = vmul.f32 %v1430, %v1431
    %v1433 = vsub.f32 1.0, %v1432
    %v1434 = vmul.f32 %v1431, %v1433
    %v1435 = vadd.f32 %v1431, %v1434
    %vm1436 = vweird.f32 %v1430
    %vm1437 = vweird.f32 %v1431
    %vm1438 = vmor %vm1436, %vm1437
    %v1439 = vsel %vm1438, %v1431, %v1435
    %v1440 = vand.u32 2147483647, %v1430
    %vm1441 = vcmp.eq.f32.partialorder %v1440, 8.507059e+37
    %v1442 = vand.u32 %v1430, 2147483648
    %v1443 = vor.u32 1.1754944e-38, %v1442
    %v1444 = vsel %vm1441, %v1443, %v1439
    %v1445 = vmul.f32 1.0, %v1444
    %v1446 = vadd.f32 %v1421, %v1029
    %v1448 = vrot.slane %v1446, 4
    %v1450 = vmul.f32 %v1445, %v1448
    %v1451 = vadd.f32 %v1011, %v1450
    %v1452 = vtanh.pop %v1451
    %v1453 = vsub.f32 1.0, %v1445
    %1455 = vrot.lane.b32.xlu0 %v1452, 64
    %v1456 = vpop.permute.xlu0 %1455
    %v1458 = vmul.f32 %v1453, %v1456
    %v1459 = vrot.slane %v1371, 7
    %v1461 = vmul.f32 %v1445, %v1459
    %v1462 = vadd.f32 %v1458, %v1461
    %1464 = vrot.lane.b32.xlu0 %v1462, 64
    %v1465 = vpop.permute.xlu0 %1464
    %1467 = vst.msk [vmem:[#allocation3] sm:$0x10] %vm601, %v1465
    %1468 = vst.msk [vmem:[#allocation3 - $0x1] sm:$0x10] %vm603, %v1465
    %v1469 = vrot.slane %v1462, 4
    %1470 = vrot.lane.b32.xlu0 %v1469, 64
    %v1471 = vpop.permute.xlu0 %1470
    %v1472 = vsel %vm152, %v1471, 0
    %1474 = vmatpush.msra.mxu0 0.0
    %1475 = vmatpush.msra.mxu0 0.0
    %1476 = vmatpush.msra.mxu0 0.0
    %1477 = vmatpush.msra.mxu0 0.0
    %1478 = vmatpush.msra.mxu0 0.0
    %1479 = vmatpush.msra.mxu0 0.0
    %1480 = vmatpush.msra.mxu0 0.0
    %1481 = vmatpush.msra.mxu0 0.0
    %1482 = vmatpush.msra.mxu0 %v1027
    %1483 = vmatpush.msra.mxu0 %v1025
    %1484 = vmatpush.msra.mxu0 %v1023
    %1485 = vmatpush.msra.mxu0 %v1021
    %1486 = vmatpush.msra.mxu0 %v1019
    %1487 = vmatpush.msra.mxu0 %v1017
    %1488 = vmatpush.msra.mxu0 %v1015
    %1489 = vmatpush.msra.mxu0 %v1013
    %1490 = vmatmul.f32.gmra.mxu0 %v1472
    %v1491 = vpop.f32.mrf.mxu0
    %v1492 = vadd.f32 0.0, %v1491
    %1493 = vdwg.mxu0
    %1494 = vmatpush.msra.mxu0 0.0
    %1495 = vmatpush.msra.mxu0 0.0
    %1496 = vmatpush.msra.mxu0 0.0
    %1497 = vmatpush.msra.mxu0 0.0
    %1498 = vmatpush.msra.mxu0 0.0
    %1499 = vmatpush.msra.mxu0 0.0
    %1500 = vmatpush.msra.mxu0 0.0
    %1501 = vmatpush.msra.mxu0 0.0
    %1502 = vmatpush.msra.mxu0 %v1028
    %1503 = vmatpush.msra.mxu0 %v1026
    %1504 = vmatpush.msra.mxu0 %v1024
    %1505 = vmatpush.msra.mxu0 %v1022
    %1506 = vmatpush.msra.mxu0 %v1020
    %1507 = vmatpush.msra.mxu0 %v1018
    %1508 = vmatpush.msra.mxu0 %v1016
    %1509 = vmatpush.msra.mxu0 %v1014
    %1510 = vmatmul.f32.gmra.mxu0 %v1472
    %v1511 = vpop.f32.mrf.mxu0
    %v1512 = vadd.f32 0.0, %v1511
    %1513 = vdwg.mxu0
    %v1515 = vrot.slane %v1492, 3
    %v1517 = vadd.f32 %v991, %v1515
    %v1518 = vsub.f32 0.0, %v1517
    %v1519 = vmul.f32 %v1518, 1.442695
    %v1520 = vpow.pop %v1519
    %v1521 = vadd.f32 %v1520, 1.0
    %v1522 = vrcp.pop %v1521
    %v1523 = vmul.f32 %v1521, %v1522
    %v1524 = vsub.f32 1.0, %v1523
    %v1525 = vmul.f32 %v1522, %v1524
    %v1526 = vadd.f32 %v1522, %v1525
    %vm1527 = vweird.f32 %v1521
    %vm1528 = vweird.f32 %v1522
    %vm1529 = vmor %vm1527, %vm1528
    %v1530 = vsel %vm1529, %v1522, %v1526
    %v1531 = vand.u32 2147483647, %v1521
    %vm1532 = vcmp.eq.f32.partialorder %v1531, 8.507059e+37
    %v1533 = vand.u32 %v1521, 2147483648
    %v1534 = vor.u32 1.1754944e-38, %v1533
    %v1535 = vsel %vm1532, %v1534, %v1530
    %v1536 = vmul.f32 1.0, %v1535
    %v1537 = vadd.f32 %v1512, %v1029
    %v1539 = vrot.slane %v1537, 3
    %v1541 = vmul.f32 %v1536, %v1539
    %v1542 = vadd.f32 %v1011, %v1541
    %v1543 = vtanh.pop %v1542
    %v1544 = vsub.f32 1.0, %v1536
    %1546 = vrot.lane.b32.xlu0 %v1543, 64
    %v1547 = vpop.permute.xlu0 %1546
    %v1549 = vmul.f32 %v1544, %v1547
    %v1550 = vrot.slane %v1462, 7
    %v1552 = vmul.f32 %v1536, %v1550
    %v1553 = vadd.f32 %v1549, %v1552
    %1555 = vrot.lane.b32.xlu0 %v1553, 64
    %v1556 = vpop.permute.xlu0 %1555
    %1558 = vst.msk [vmem:[#allocation3] sm:$0x20] %vm694, %v1556
    %1559 = vst.msk [vmem:[#allocation3 - $0x3] sm:$0x20] %vm696, %v1556
    %v1560 = vrot.slane %v1553, 5
    %1561 = vrot.lane.b32.xlu0 %v1560, 64
    %v1562 = vpop.permute.xlu0 %1561
    %v1563 = vsel %vm152, %v1562, 0
    %1565 = vmatpush.msra.mxu0 0.0
    %1566 = vmatpush.msra.mxu0 0.0
    %1567 = vmatpush.msra.mxu0 0.0
    %1568 = vmatpush.msra.mxu0 0.0
    %1569 = vmatpush.msra.mxu0 0.0
    %1570 = vmatpush.msra.mxu0 0.0
    %1571 = vmatpush.msra.mxu0 0.0
    %1572 = vmatpush.msra.mxu0 0.0
    %1573 = vmatpush.msra.mxu0 %v1027
    %1574 = vmatpush.msra.mxu0 %v1025
    %1575 = vmatpush.msra.mxu0 %v1023
    %1576 = vmatpush.msra.mxu0 %v1021
    %1577 = vmatpush.msra.mxu0 %v1019
    %1578 = vmatpush.msra.mxu0 %v1017
    %1579 = vmatpush.msra.mxu0 %v1015
    %1580 = vmatpush.msra.mxu0 %v1013
    %1581 = vmatmul.f32.gmra.mxu0 %v1563
    %v1582 = vpop.f32.mrf.mxu0
    %v1583 = vadd.f32 0.0, %v1582
    %1584 = vdwg.mxu0
    %1585 = vmatpush.msra.mxu0 0.0
    %1586 = vmatpush.msra.mxu0 0.0
    %1587 = vmatpush.msra.mxu0 0.0
    %1588 = vmatpush.msra.mxu0 0.0
    %1589 = vmatpush.msra.mxu0 0.0
    %1590 = vmatpush.msra.mxu0 0.0
    %1591 = vmatpush.msra.mxu0 0.0
    %1592 = vmatpush.msra.mxu0 0.0
    %1593 = vmatpush.msra.mxu0 %v1028
    %1594 = vmatpush.msra.mxu0 %v1026
    %1595 = vmatpush.msra.mxu0 %v1024
    %1596 = vmatpush.msra.mxu0 %v1022
    %1597 = vmatpush.msra.mxu0 %v1020
    %1598 = vmatpush.msra.mxu0 %v1018
    %1599 = vmatpush.msra.mxu0 %v1016
    %1600 = vmatpush.msra.mxu0 %v1014
    %1601 = vmatmul.f32.gmra.mxu0 %v1563
    %v1602 = vpop.f32.mrf.mxu0
    %v1603 = vadd.f32 0.0, %v1602
    %1604 = vdwg.mxu0
    %v1606 = vrot.slane %v1583, 2
    %v1608 = vadd.f32 %v991, %v1606
    %v1609 = vsub.f32 0.0, %v1608
    %v1610 = vmul.f32 %v1609, 1.442695
    %v1611 = vpow.pop %v1610
    %v1612 = vadd.f32 %v1611, 1.0
    %v1613 = vrcp.pop %v1612
    %v1614 = vmul.f32 %v1612, %v1613
    %v1615 = vsub.f32 1.0, %v1614
    %v1616 = vmul.f32 %v1613, %v1615
    %v1617 = vadd.f32 %v1613, %v1616
    %vm1618 = vweird.f32 %v1612
    %vm1619 = vweird.f32 %v1613
    %vm1620 = vmor %vm1618, %vm1619
    %v1621 = vsel %vm1620, %v1613, %v1617
    %v1622 = vand.u32 2147483647, %v1612
    %vm1623 = vcmp.eq.f32.partialorder %v1622, 8.507059e+37
    %v1624 = vand.u32 %v1612, 2147483648
    %v1625 = vor.u32 1.1754944e-38, %v1624
    %v1626 = vsel %vm1623, %v1625, %v1621
    %v1627 = vmul.f32 1.0, %v1626
    %v1628 = vadd.f32 %v1603, %v1029
    %v1630 = vrot.slane %v1628, 2
    %v1632 = vmul.f32 %v1627, %v1630
    %v1633 = vadd.f32 %v1011, %v1632
    %v1634 = vtanh.pop %v1633
    %v1635 = vsub.f32 1.0, %v1627
    %1637 = vrot.lane.b32.xlu0 %v1634, 64
    %v1638 = vpop.permute.xlu0 %1637
    %v1640 = vmul.f32 %v1635, %v1638
    %v1641 = vrot.slane %v1553, 7
    %v1643 = vmul.f32 %v1627, %v1641
    %v1644 = vadd.f32 %v1640, %v1643
    %1646 = vrot.lane.b32.xlu0 %v1644, 64
    %v1647 = vpop.permute.xlu0 %1646
    %1649 = vst.msk [vmem:[#allocation3] sm:$0x40] %vm787, %v1647
    %1650 = vst.msk [vmem:[#allocation3 - $0x5] sm:$0x40] %vm789, %v1647
    %v1651 = vrot.slane %v1644, 6
    %1652 = vrot.lane.b32.xlu0 %v1651, 64
    %v1653 = vpop.permute.xlu0 %1652
    %v1654 = vsel %vm152, %v1653, 0
    %1656 = vmatpush.msra.mxu0 0.0
    %1657 = vmatpush.msra.mxu0 0.0
    %1658 = vmatpush.msra.mxu0 0.0
    %1659 = vmatpush.msra.mxu0 0.0
    %1660 = vmatpush.msra.mxu0 0.0
    %1661 = vmatpush.msra.mxu0 0.0
    %1662 = vmatpush.msra.mxu0 0.0
    %1663 = vmatpush.msra.mxu0 0.0
    %1664 = vmatpush.msra.mxu0 %v1027
    %1665 = vmatpush.msra.mxu0 %v1025
    %1666 = vmatpush.msra.mxu0 %v1023
    %1667 = vmatpush.msra.mxu0 %v1021
    %1668 = vmatpush.msra.mxu0 %v1019
    %1669 = vmatpush.msra.mxu0 %v1017
    %1670 = vmatpush.msra.mxu0 %v1015
    %1671 = vmatpush.msra.mxu0 %v1013
    %1672 = vmatmul.f32.gmra.mxu0 %v1654
    %v1673 = vpop.f32.mrf.mxu0
    %v1674 = vadd.f32 0.0, %v1673
    %1675 = vdwg.mxu0
    %1676 = vmatpush.msra.mxu0 0.0
    %1677 = vmatpush.msra.mxu0 0.0
    %1678 = vmatpush.msra.mxu0 0.0
    %1679 = vmatpush.msra.mxu0 0.0
    %1680 = vmatpush.msra.mxu0 0.0
    %1681 = vmatpush.msra.mxu0 0.0
    %1682 = vmatpush.msra.mxu0 0.0
    %1683 = vmatpush.msra.mxu0 0.0
    %1684 = vmatpush.msra.mxu0 %v1028
    %1685 = vmatpush.msra.mxu0 %v1026
    %1686 = vmatpush.msra.mxu0 %v1024
    %1687 = vmatpush.msra.mxu0 %v1022
    %1688 = vmatpush.msra.mxu0 %v1020
    %1689 = vmatpush.msra.mxu0 %v1018
    %1690 = vmatpush.msra.mxu0 %v1016
    %1691 = vmatpush.msra.mxu0 %v1014
    %1692 = vmatmul.f32.gmra.mxu0 %v1654
    %v1693 = vpop.f32.mrf.mxu0
    %v1694 = vadd.f32 0.0, %v1693
    %1695 = vdwg.mxu0
    %v1697 = vrot.slane %v1674, 1
    %v1699 = vadd.f32 %v991, %v1697
    %v1700 = vsub.f32 0.0, %v1699
    %v1701 = vmul.f32 %v1700, 1.442695
    %v1702 = vpow.pop %v1701
    %v1703 = vadd.f32 %v1702, 1.0
    %v1704 = vrcp.pop %v1703
    %v1705 = vmul.f32 %v1703, %v1704
    %v1706 = vsub.f32 1.0, %v1705
    %v1707 = vmul.f32 %v1704, %v1706
    %v1708 = vadd.f32 %v1704, %v1707
    %vm1709 = vweird.f32 %v1703
    %vm1710 = vweird.f32 %v1704
    %vm1711 = vmor %vm1709, %vm1710
    %v1712 = vsel %vm1711, %v1704, %v1708
    %v1713 = vand.u32 2147483647, %v1703
    %vm1714 = vcmp.eq.f32.partialorder %v1713, 8.507059e+37
    %v1715 = vand.u32 %v1703, 2147483648
    %v1716 = vor.u32 1.1754944e-38, %v1715
    %v1717 = vsel %vm1714, %v1716, %v1712
    %v1718 = vmul.f32 1.0, %v1717
    %v1719 = vadd.f32 %v1694, %v1029
    %v1721 = vrot.slane %v1719, 1
    %v1723 = vmul.f32 %v1718, %v1721
    %v1724 = vadd.f32 %v1011, %v1723
    %v1725 = vtanh.pop %v1724
    %v1726 = vsub.f32 1.0, %v1718
    %1728 = vrot.lane.b32.xlu0 %v1725, 64
    %v1729 = vpop.permute.xlu0 %1728
    %v1731 = vmul.f32 %v1726, %v1729
    %v1732 = vrot.slane %v1644, 7
    %v1734 = vmul.f32 %v1718, %v1732
    %v1735 = vadd.f32 %v1731, %v1734
    %1737 = vrot.lane.b32.xlu0 %v1735, 64
    %v1738 = vpop.permute.xlu0 %1737
    %1740 = vst.msk [vmem:[#allocation3] sm:$0x80] %vm880, %v1738
    %1741 = vst.msk [vmem:[#allocation3 - $0x7] sm:$0x80] %vm882, %v1738
    %v1742 = vld [vmem:[#allocation3] sm:$0xff]
    %v1743 = vmax.f32 %v1742, 0.0
    %v1744 = vld [vmem:[%s13] sm:$0xff]
    %v1745 = vld [vmem:[%s13 + $0x8] sm:$0xff]
    %v1746 = vld [vmem:[%s13 + $0x10] sm:$0xff]
    %v1747 = vld [vmem:[%s13 + $0x18] sm:$0xff]
    %v1748 = vld [vmem:[%s13 + $0x20] sm:$0xff]
    %v1749 = vld [vmem:[%s13 + $0x28] sm:$0xff]
    %v1750 = vld [vmem:[%s13 + $0x30] sm:$0xff]
    %v1751 = vld [vmem:[%s13 + $0x38] sm:$0xff]
    %v1752 = vld [vmem:[%s14] sm:$0x1]
    %v1754 = vperm.slane %v1752, 0
    %v1757 = vsel %vm152, %v1743, 0
    %1759 = vmatpush.msra.mxu0 0.0
    %1760 = vmatpush.msra.mxu0 0.0
    %1761 = vmatpush.msra.mxu0 0.0
    %1762 = vmatpush.msra.mxu0 0.0
    %1763 = vmatpush.msra.mxu0 0.0
    %1764 = vmatpush.msra.mxu0 0.0
    %1765 = vmatpush.msra.mxu0 0.0
    %1766 = vmatpush.msra.mxu0 0.0
    %1767 = vmatpush.msra.mxu0 %v1751
    %1768 = vmatpush.msra.mxu0 %v1750
    %1769 = vmatpush.msra.mxu0 %v1749
    %1770 = vmatpush.msra.mxu0 %v1748
    %1771 = vmatpush.msra.mxu0 %v1747
    %1772 = vmatpush.msra.mxu0 %v1746
    %1773 = vmatpush.msra.mxu0 %v1745
    %1774 = vmatpush.msra.mxu0 %v1744
    %1775 = vmatmul.f32.gmra.mxu0 %v1757
    %v1776 = vpop.f32.mrf.mxu0
    %v1777 = vadd.f32 %v1754, %v1776
    %1778 = vdwg.mxu0
    %1779 = vst.msk [vmem:[%s16] sm:$0xff] %vm75, %v1777
    // Predicated region
    $region66: #{vtae_forward.1} parent=1 // pred_check
      _
    $region67: #{vtae_forward.1} parent=1 // pred_check_branch
      %1781 = sbr.rel (0) target = $region69
    $region68: #{vtae_forward.1} parent=1 // pred_region
      %1783 = vsyncadd [#allocation6], 0
      %s1785 = sshll.u32 [#allocation7], 4
      %s1786 = int_to_ptr.vmem [resolvable:$true] %s1785
      %s1787 = sshll.u32 %s15, 4
      %s1788 = int_to_ptr.hbm [resolvable:$true] %s1787
      %1790 = dma.vmem_to_hbm [thread:$0]  %s1786, 128, %s1788, [#allocation6]
    $region69: #{vtae_forward.1} parent=1 // pred_fallthru
      _
    // Predicated region
    $region70: #{vtae_forward.1} parent=1 // pred_check
      _
    $region71: #{vtae_forward.1} parent=1 // pred_check_branch
      %1792 = sbr.rel (0) target = $region73
    $region72: #{vtae_forward.1} parent=1 // pred_region
      _
    $region73: #{vtae_forward.1} parent=1 // pred_fallthru
      _
    // Predicated region
    $region74: #{vtae_forward.1} parent=1 // pred_check
      _
    $region75: #{vtae_forward.1} parent=1 // pred_check_branch
      %1794 = sbr.rel (0) target = $region77
    $region76: #{vtae_forward.1} parent=1 // pred_region
      %1796 = dma.done [#allocation6], 128
    $region77: #{vtae_forward.1} parent=1 // pred_fallthru
      _
    // Predicated region
    $region78: #{vtae_forward.1} parent=1 // pred_check
      _
    $region79: #{vtae_forward.1} parent=1 // pred_check_branch
      %1798 = sbr.rel (0) target = $region81
    $region80: #{vtae_forward.1} parent=1 // pred_region
      _
    $region81: #{vtae_forward.1} parent=1 // pred_fallthru
      _
    %1799 = vsyncpa [#allocation5], 1
    %1800 = vsyncpa [#allocation6], 1

</llo_original>
